<compile_context>
chip_gen: v6e
topology: v6e:2x2x1
jax: 0.10.0
libtpu: 0.0.40
codegen_flags: <defaults>
</compile_context>

<pallas_src>
import functools

import numpy as np

import jax
import jax.numpy as jnp
from jax.experimental import pallas as pl
from jax.experimental.pallas import tpu as pltpu

K, STRIDE, PAD = 4, 2, 1  # 'C4-<ch>-2' conv layers with 'same' padding


# ----------------------------------------------------------------------------
# Fused Pallas kernel: conv1 + conv2 + pool + fc + classifiers + cross-entropy
# ----------------------------------------------------------------------------
def _fused_forward_kernel(p1_ref, w1_ref, b1_ref, g_ref, w2_ref, b2_ref,
                          pool_ref, wfc_ref, bfc_ref, wh_ref, bh_ref,
                          onehot_ref, head_ref, patches2_ref,
                          *, num_taps, num_obj, ce_col):
    f32, bf16 = jnp.float32, jnp.bfloat16

    # ---- conv1: ReLU(patches1 @ w1 + b1) ------------------------------------
    a1 = jnp.dot(p1_ref[...], w1_ref[...], preferred_element_type=f32)
    a1 = jnp.maximum(a1 + b1_ref[...], 0.0).astype(bf16)          # (M1b, C1)

    # ---- conv2 gather: ONE fat matmul for all K*K taps ----------------------
    # g is a 0/1 selection matrix stacked tap-major: row t*M2b+m selects the
    # conv1 activation row feeding tap t at output position m (all-zero row
    # when the tap falls in the zero padding).  Result rows are exact copies
    # of bf16 a1 values.
    taps = jnp.dot(g_ref[...], a1, preferred_element_type=f32)    # (T*M2b, C1)

    m2b = pool_ref.shape[1]          # conv2 output positions in this block
    c1 = a1.shape[1]
    # Relayout (T*M2b, C1) -> (M2b, T*C1) via static lane-slice stores into a
    # VMEM scratch (f32 stores = most robust masked-store path); a single
    # fused bf16 cast happens on the read below instead of 16 per-tap casts.
    for t in range(num_taps):                                      # static
        patches2_ref[:, t * c1:(t + 1) * c1] = taps[t * m2b:(t + 1) * m2b, :]

    # ---- conv2 reduce: ONE matmul over the full K*K*C1 contraction ----------
    patches2 = patches2_ref[...].astype(bf16)                      # (M2b, T*C1)
    a2 = jnp.dot(patches2, w2_ref[...], preferred_element_type=f32)
    a2 = jnp.maximum(a2 + b2_ref[...], 0.0)                        # (M2b, C2) f32

    # ---- GlobalAvgPool (exact f32 block-diag matrix) + Linear(D, 1024) ------
    pooled = jnp.dot(pool_ref[...], a2, preferred_element_type=f32)    # (NB, C2)
    h = jnp.dot(pooled.astype(bf16), wfc_ref[...],
                preferred_element_type=f32) + bfc_ref[...]         # (NB, HID)

    # ---- fused classifiers: [real | obj | zero-pad], lane-dense 128 wide ----
    scores = jnp.dot(h.astype(bf16), wh_ref[...],
                     preferred_element_type=f32) + bh_ref[...]     # (NB, HW)

    # ---- per-sample F.cross_entropy(obj_scores, y), stored at lane ce_col ---
    col = jax.lax.broadcasted_iota(jnp.int32, scores.shape, 1)
    is_obj = jnp.logical_and(col >= 1, col < 1 + num_obj)
    masked = jnp.where(is_obj, scores, -1e30)
    m = jnp.max(masked, axis=-1, keepdims=True)                    # (NB, 1)
    e = jnp.where(is_obj, jnp.exp(masked - m), 0.0)
    lse = jnp.log(jnp.sum(e, axis=-1, keepdims=True)) + m          # (NB, 1)
    label_logit = jnp.sum(scores * onehot_ref[...], axis=-1, keepdims=True)
    ce = lse - label_logit                                         # (NB, 1)

    head_ref[...] = jnp.where(col == ce_col, ce, scores)


# ----------------------------------------------------------------------------
# Wrapper-side helpers (numpy constants are built at trace time only)
# ----------------------------------------------------------------------------
def _im2col(x_nhwc, k, stride, pad):
    """x: (N, H, W, C) -> patches (N*OH*OW, K*K*C), column order (kh, kw, c)."""
    xp = jnp.pad(x_nhwc, ((0, 0), (pad, pad), (pad, pad), (0, 0)))
    n, hh, ww, c = xp.shape
    oh = (hh - k) // stride + 1
    ow = (ww - k) // stride + 1
    cols = []
    for kh in range(k):
        for kw in range(k):
            cols.append(xp[:, kh:kh + stride * oh:stride,
                           kw:kw + stride * ow:stride, :])
    patches = jnp.concatenate(cols, axis=-1)
    return patches.reshape(n * oh * ow, k * k * c), oh, ow


@functools.lru_cache(maxsize=None)
def _build_tap_selectors(n, h, w, k, stride, pad):
    """0/1 matrices stacked tap-major as (k*k*M2, M1), batch-block size n."""
    oh = (h + 2 * pad - k) // stride + 1
    ow = (w + 2 * pad - k) // stride + 1
    m1, m2 = n * h * w, n * oh * ow
    g = np.zeros((k * k * m2, m1), np.float32)
    for t in range(k * k):
        kh, kw = t // k, t % k
        for b in range(n):
            for r in range(oh):
                ih = stride * r + kh - pad
                if not 0 <= ih < h:
                    continue
                for c in range(ow):
                    iw = stride * c + kw - pad
                    if 0 <= iw < w:
                        g[t * m2 + (b * oh + r) * ow + c,
                          (b * h + ih) * w + iw] = 1.0
    return g, oh, ow


@functools.lru_cache(maxsize=None)
def _build_pool_matrix(n, s):
    """(n, n*s) block-diagonal averaging matrix: GlobalAvgPool as a matmul."""
    return np.kron(np.eye(n, dtype=np.float32),
                   np.full((1, s), 1.0 / s, np.float32))


# ----------------------------------------------------------------------------
# One-time parameter preparation (hoisted out of the per-call forward)
# ----------------------------------------------------------------------------
def prepare_ac_discriminator_params(params):
    bf16, f32 = jnp.bfloat16, jnp.float32
    c1 = params["w_c1"].shape[-1]
    c2 = params["w_c2"].shape[-1]
    hid = params["w_fc"].shape[-1]
    nobj = params["w_obj"].shape[-1]
    hw = ((nobj + 2 + 127) // 128) * 128      # lane-dense head + spare CE lane

    wh = jnp.zeros((hid, hw), f32)
    wh = wh.at[:, 0:1].set(params["w_real"])
    wh = wh.at[:, 1:1 + nobj].set(params["w_obj"])
    bh = jnp.zeros((1, hw), f32)
    bh = bh.at[:, 0:1].set(params["b_real"].reshape(1, 1))
    bh = bh.at[:, 1:1 + nobj].set(params["b_obj"].reshape(1, nobj))

    return {
        "w1": params["w_c1"].reshape(-1, c1).astype(bf16),   # (K*K*Cin, C1)
        "b1": params["b_c1"].reshape(1, c1).astype(f32),
        "w2": params["w_c2"].reshape(-1, c2).astype(bf16),   # (K*K*C1, C2)
        "b2": params["b_c2"].reshape(1, c2).astype(f32),
        "wfc": params["w_fc"].astype(bf16),                  # (C2, HID)
        "bfc": params["b_fc"].reshape(1, hid).astype(f32),
        "wh": wh.astype(bf16),                               # (HID, HW)
        "bh": bh,                                            # (1, HW) f32
    }


# ----------------------------------------------------------------------------
# Forward
# ----------------------------------------------------------------------------
def ac_discriminator_forward(x, y, prep, *, num_obj, images_per_step=None):
    # torch: if x.dim() == 3: x = x[:, None]
    if x.ndim == 3:
        x = x[:, None]
    bf16, f32 = jnp.bfloat16, jnp.float32
    n = x.shape[0]

    # Batch block per grid step: whole batch when small, else 8 images per
    # step (>=256 conv1 rows -> fills the 256-wide MXU on v6e/v7x).
    if images_per_step is not None:
        nb = images_per_step
    elif n <= 8:
        nb = n
    elif n % 8 == 0:
        nb = 8
    else:
        nb = n   # TODO(synk): pad batch to a multiple of 8 to enable gridding
    assert n % nb == 0 and (nb == n or nb % 8 == 0)
    num_steps = n // nb

    x_nhwc = jnp.transpose(x, (0, 2, 3, 1))                 # NCHW -> NHWC
    # conv1 patches: im2col in the wrapper, emitted in bf16 (input-dependent).
    p1, oh1, ow1 = _im2col(x_nhwc.astype(bf16), K, STRIDE, PAD)
    s1 = oh1 * ow1
    k1 = p1.shape[1]

    # Batch-block-independent trace-time constants (O(nb^2), NOT O(n^2)).
    g_np, oh2, ow2 = _build_tap_selectors(nb, oh1, ow1, K, STRIDE, PAD)
    s2 = oh2 * ow2
    g = jnp.asarray(g_np, dtype=bf16)                       # (K*K*nb*s2, nb*s1)
    pool = jnp.asarray(_build_pool_matrix(nb, s2), f32)     # (nb, nb*s2) exact

    c1 = prep["w1"].shape[1]
    c2 = prep["w2"].shape[1]
    k2 = prep["w2"].shape[0]
    hid = prep["wfc"].shape[1]
    hw = prep["wh"].shape[1]
    ce_col = hw - 1
    assert prep["w1"].shape[0] == k1
    assert ce_col > num_obj                                  # spare CE lane

    # Label one-hot over the fused head lanes (label column = 1 + y).
    onehot = jax.nn.one_hot(y.astype(jnp.int32) + 1, hw, dtype=f32)   # (n, hw)

    kernel = functools.partial(_fused_forward_kernel, num_taps=K * K,
                               num_obj=num_obj, ce_col=ce_col)

    head = pl.pallas_call(
        kernel,
        out_shape=jax.ShapeDtypeStruct((n, hw), f32),
        grid=(num_steps,),
        in_specs=[
            pl.BlockSpec((nb * s1, k1), lambda i: (i, 0)),          # conv1 patches
            pl.BlockSpec((k1, c1), lambda i: (0, 0)),               # w1
            pl.BlockSpec((1, c1), lambda i: (0, 0)),                # b1
            pl.BlockSpec((K * K * nb * s2, nb * s1), lambda i: (0, 0)),  # selectors
            pl.BlockSpec((k2, c2), lambda i: (0, 0)),               # w2 (stacked)
            pl.BlockSpec((1, c2), lambda i: (0, 0)),                # b2
            pl.BlockSpec((nb, nb * s2), lambda i: (0, 0)),          # pool matrix
            pl.BlockSpec((c2, hid), lambda i: (0, 0)),              # w_fc
            pl.BlockSpec((1, hid), lambda i: (0, 0)),               # b_fc
            pl.BlockSpec((hid, hw), lambda i: (0, 0)),              # fused head W
            pl.BlockSpec((1, hw), lambda i: (0, 0)),                # fused head b
            pl.BlockSpec((nb, hw), lambda i: (i, 0)),               # label one-hot
        ],
        out_specs=pl.BlockSpec((nb, hw), lambda i: (i, 0)),
        scratch_shapes=[pltpu.VMEM((nb * s2, K * K * c1), jnp.float32)],
        compiler_params=pltpu.CompilerParams(
            dimension_semantics=("parallel",),        # both TCs on v7x
            vmem_limit_bytes=32 * 1024 * 1024),
    )(p1, prep["w1"], prep["b1"], g, prep["w2"], prep["b2"], pool,
      prep["wfc"], prep["bfc"], prep["wh"], prep["bh"], onehot)

    real_scores = head[:, 0:1]                       # (N, 1)
    ac_loss = jnp.mean(head[:, ce_col])              # batch-mean of per-sample CE
    return real_scores, ac_loss


# ----------------------------------------------------------------------------
# Pure-JAX reference mirroring the kernel's bf16/f32 dtype handling
# ----------------------------------------------------------------------------
def _reference(x_nchw, y, params):
    bf, f32 = jnp.bfloat16, jnp.float32
    x = jnp.transpose(x_nchw, (0, 2, 3, 1))
    n = x.shape[0]
    c1 = params["w_c1"].shape[-1]
    c2 = params["w_c2"].shape[-1]

    p1, oh1, ow1 = _im2col(x.astype(bf), K, STRIDE, PAD)
    a1 = jnp.dot(p1, params["w_c1"].reshape(-1, c1).astype(bf),
                 preferred_element_type=f32) + params["b_c1"]
    a1 = jnp.maximum(a1, 0.0).astype(bf).reshape(n, oh1, ow1, c1)

    p2, oh2, ow2 = _im2col(a1, K, STRIDE, PAD)
    a2 = jnp.dot(p2, params["w_c2"].reshape(-1, c2).astype(bf),
                 preferred_element_type=f32) + params["b_c2"]
    a2 = jnp.maximum(a2, 0.0).reshape(n, oh2 * ow2, c2)
    pooled = a2.mean(axis=1)

    h = jnp.dot(pooled.astype(bf), params["w_fc"].astype(bf),
                preferred_element_type=f32) + params["b_fc"]
    h = h.astype(bf)
    real = jnp.dot(h, params["w_real"].astype(bf),
                   preferred_element_type=f32) + params["b_real"]
    obj = jnp.dot(h, params["w_obj"].astype(bf),
                  preferred_element_type=f32) + params["b_obj"]
    logp = obj - jax.scipy.special.logsumexp(obj, axis=-1, keepdims=True)
    ce = -jnp.take_along_axis(logp, y[:, None], axis=-1).mean()
    return real, ce


# ----------------------------------------------------------------------------
# Main
# ----------------------------------------------------------------------------
if __name__ == "__main__":
    key = jax.random.PRNGKey(0)
    ks = jax.random.split(key, 10)

    N, CIN, H, W = 2, 3, 16, 16
    C1, C2, HID, NUM_OBJ = 32, 64, 1024, 8   # arch ~ 'C4-32-2,C4-64-2'; D = 64

    def init(k, shape, fan_in):
        return jax.random.normal(k, shape, jnp.float32) / jnp.sqrt(fan_in)

    params = {
        "w_c1": init(ks[0], (4, 4, CIN, C1), 4 * 4 * CIN),
        "b_c1": jnp.zeros((C1,), jnp.float32),
        "w_c2": init(ks[1], (4, 4, C1, C2), 4 * 4 * C1),
        "b_c2": jnp.zeros((C2,), jnp.float32),
        "w_fc": init(ks[2], (C2, HID), C2),
        "b_fc": init(ks[3], (HID,), C2),
        "w_real": init(ks[4], (HID, 1), HID),
        "b_real": init(ks[5], (1,), HID),
        "w_obj": init(ks[6], (HID, NUM_OBJ), HID),
        "b_obj": init(ks[7], (NUM_OBJ,), HID),
    }

    x = jax.random.normal(ks[8], (N, CIN, H, W), jnp.float32)
    y = jax.random.randint(ks[9], (N,), 0, NUM_OBJ, jnp.int32)

    # One-time weight preparation (hoisted out of the per-call forward).
    prep = prepare_ac_discriminator_params(params)
    prep = jax.device_put(prep)

    fwd = jax.jit(functools.partial(ac_discriminator_forward, num_obj=NUM_OBJ))
    real_scores, ac_loss = fwd(x, y, prep)
    jax.block_until_ready((real_scores, ac_loss))

    # Sanity check against a pure-JAX reference mirroring the bf16 casts.
    real_want, loss_want = _reference(x, y, params)
    assert real_scores.shape == (N, 1)
    assert jnp.allclose(real_scores, real_want, atol=1e-2, rtol=1e-2)
    assert jnp.allclose(ac_loss, loss_want, atol=1e-2, rtol=1e-2)
    assert bool(jnp.isfinite(ac_loss))

    print("KERNEL_OK")
</pallas_src>

<mosaic_0001>
module attributes {stable_mosaic.version = 11 : i64} {
  func.func @_fused_forward_kernel(%arg0: i32, %arg1: memref<128x48xbf16, #tpu.memory_space<vmem>>, %arg2: memref<48x32xbf16, #tpu.memory_space<vmem>>, %arg3: memref<1x32xf32, #tpu.memory_space<vmem>>, %arg4: memref<512x128xbf16, #tpu.memory_space<vmem>>, %arg5: memref<512x64xbf16, #tpu.memory_space<vmem>>, %arg6: memref<1x64xf32, #tpu.memory_space<vmem>>, %arg7: memref<2x32xf32, #tpu.memory_space<vmem>>, %arg8: memref<64x1024xbf16, #tpu.memory_space<vmem>>, %arg9: memref<1x1024xf32, #tpu.memory_space<vmem>>, %arg10: memref<1024x128xbf16, #tpu.memory_space<vmem>>, %arg11: memref<1x128xf32, #tpu.memory_space<vmem>>, %arg12: memref<2x128xf32, #tpu.memory_space<vmem>>, %arg13: memref<2x128xf32, #tpu.memory_space<vmem>>, %arg14: memref<32x512xf32, #tpu.memory_space<vmem>>) attributes {dimension_semantics = [#tpu.dimension_semantics<parallel>], iteration_bounds = array<i64: 1>, scalar_prefetch = 0 : i64, scratch_operands = 1 : i64, tpu.core_type = #tpu.core_type<tc>, window_params = [{transform_indices = @transform_0, window_bounds = array<i64: 128, 48>}, {pipeline_mode = #tpu.pipeline_mode<synchronous>, transform_indices = @transform_1, window_bounds = array<i64: 48, 32>}, {pipeline_mode = #tpu.pipeline_mode<synchronous>, transform_indices = @transform_2, window_bounds = array<i64: 1, 32>}, {pipeline_mode = #tpu.pipeline_mode<synchronous>, transform_indices = @transform_3, window_bounds = array<i64: 512, 128>}, {pipeline_mode = #tpu.pipeline_mode<synchronous>, transform_indices = @transform_4, window_bounds = array<i64: 512, 64>}, {pipeline_mode = #tpu.pipeline_mode<synchronous>, transform_indices = @transform_5, window_bounds = array<i64: 1, 64>}, {pipeline_mode = #tpu.pipeline_mode<synchronous>, transform_indices = @transform_6, window_bounds = array<i64: 2, 32>}, {pipeline_mode = #tpu.pipeline_mode<synchronous>, transform_indices = @transform_7, window_bounds = array<i64: 64, 1024>}, {pipeline_mode = #tpu.pipeline_mode<synchronous>, transform_indices = @transform_8, window_bounds = array<i64: 1, 1024>}, {pipeline_mode = #tpu.pipeline_mode<synchronous>, transform_indices = @transform_9, window_bounds = array<i64: 1024, 128>}, {pipeline_mode = #tpu.pipeline_mode<synchronous>, transform_indices = @transform_10, window_bounds = array<i64: 1, 128>}, {transform_indices = @transform_11, window_bounds = array<i64: 2, 128>}, {transform_indices = @transform_12, window_bounds = array<i64: 2, 128>}]} {
    %c0 = arith.constant 0 : index
    %c0_0 = arith.constant 0 : index
    %0 = vector.load %arg1[%c0, %c0_0] : memref<128x48xbf16, #tpu.memory_space<vmem>>, vector<128x48xbf16>
    %c0_1 = arith.constant 0 : index
    %c0_2 = arith.constant 0 : index
    %1 = vector.load %arg2[%c0_1, %c0_2] : memref<48x32xbf16, #tpu.memory_space<vmem>>, vector<48x32xbf16>
    %cst = arith.constant dense<0.000000e+00> : vector<128x32xf32>
    %2 = tpu.matmul %0, %1, %cst {dimension_numbers = #tpu.dot_dimension_numbers<[1], [0], [0], [1], [0, 0, 1, 1], [], []>} : vector<128x48xbf16>, vector<48x32xbf16>, vector<128x32xf32> -> vector<128x32xf32>
    %c0_3 = arith.constant 0 : index
    %c0_4 = arith.constant 0 : index
    %3 = vector.load %arg3[%c0_3, %c0_4] : memref<1x32xf32, #tpu.memory_space<vmem>>, vector<1x32xf32>
    %4 = vector.broadcast %3 : vector<1x32xf32> to vector<128x32xf32>
    %5 = arith.addf %2, %4 : vector<128x32xf32>
    %cst_5 = arith.constant 0.000000e+00 : f32
    %6 = vector.broadcast %cst_5 : f32 to vector<128x32xf32>
    %7 = arith.maximumf %5, %6 : vector<128x32xf32>
    %8 = arith.truncf %7 : vector<128x32xf32> to vector<128x32xbf16>
    %c0_6 = arith.constant 0 : index
    %c0_7 = arith.constant 0 : index
    %9 = vector.load %arg4[%c0_6, %c0_7] : memref<512x128xbf16, #tpu.memory_space<vmem>>, vector<512x128xbf16>
    %cst_8 = arith.constant dense<0.000000e+00> : vector<512x32xf32>
    %10 = tpu.matmul %9, %8, %cst_8 {dimension_numbers = #tpu.dot_dimension_numbers<[1], [0], [0], [1], [0, 0, 1, 1], [], []>} : vector<512x128xbf16>, vector<128x32xbf16>, vector<512x32xf32> -> vector<512x32xf32>
    %11 = vector.extract_strided_slice %10 {offsets = [0, 0], sizes = [32, 32], strides = [1, 1]} : vector<512x32xf32> to vector<32x32xf32>
    %c0_9 = arith.constant 0 : index
    %c0_10 = arith.constant 0 : index
    %12 = vector.load %arg14[%c0_9, %c0_10] : memref<32x512xf32, #tpu.memory_space<vmem>>, vector<32x32xf32>
    tpu.vector_store %arg14[%c0_9, %c0_10], %11 {strides = array<i32>} : memref<32x512xf32, #tpu.memory_space<vmem>>, vector<32x32xf32>,
    %13 = vector.extract_strided_slice %10 {offsets = [32, 0], sizes = [32, 32], strides = [1, 1]} : vector<512x32xf32> to vector<32x32xf32>
    %c0_11 = arith.constant 0 : index
    %c32 = arith.constant 32 : index
    %14 = vector.load %arg14[%c0_11, %c32] : memref<32x512xf32, #tpu.memory_space<vmem>>, vector<32x32xf32>
    tpu.vector_store %arg14[%c0_11, %c32], %13 {strides = array<i32>} : memref<32x512xf32, #tpu.memory_space<vmem>>, vector<32x32xf32>,
    %15 = vector.extract_strided_slice %10 {offsets = [64, 0], sizes = [32, 32], strides = [1, 1]} : vector<512x32xf32> to vector<32x32xf32>
    %c0_12 = arith.constant 0 : index
    %c64 = arith.constant 64 : index
    %16 = vector.load %arg14[%c0_12, %c64] : memref<32x512xf32, #tpu.memory_space<vmem>>, vector<32x32xf32>
    tpu.vector_store %arg14[%c0_12, %c64], %15 {strides = array<i32>} : memref<32x512xf32, #tpu.memory_space<vmem>>, vector<32x32xf32>,
    %17 = vector.extract_strided_slice %10 {offsets = [96, 0], sizes = [32, 32], strides = [1, 1]} : vector<512x32xf32> to vector<32x32xf32>
    %c0_13 = arith.constant 0 : index
    %c96 = arith.constant 96 : index
    %18 = vector.load %arg14[%c0_13, %c96] : memref<32x512xf32, #tpu.memory_space<vmem>>, vector<32x32xf32>
    tpu.vector_store %arg14[%c0_13, %c96], %17 {strides = array<i32>} : memref<32x512xf32, #tpu.memory_space<vmem>>, vector<32x32xf32>,
    %19 = vector.extract_strided_slice %10 {offsets = [128, 0], sizes = [32, 32], strides = [1, 1]} : vector<512x32xf32> to vector<32x32xf32>
    %c0_14 = arith.constant 0 : index
    %c128 = arith.constant 128 : index
    %20 = vector.load %arg14[%c0_14, %c128] : memref<32x512xf32, #tpu.memory_space<vmem>>, vector<32x32xf32>
    tpu.vector_store %arg14[%c0_14, %c128], %19 {strides = array<i32>} : memref<32x512xf32, #tpu.memory_space<vmem>>, vector<32x32xf32>,
    %21 = vector.extract_strided_slice %10 {offsets = [160, 0], sizes = [32, 32], strides = [1, 1]} : vector<512x32xf32> to vector<32x32xf32>
    %c0_15 = arith.constant 0 : index
    %c160 = arith.constant 160 : index
    %22 = vector.load %arg14[%c0_15, %c160] : memref<32x512xf32, #tpu.memory_space<vmem>>, vector<32x32xf32>
    tpu.vector_store %arg14[%c0_15, %c160], %21 {strides = array<i32>} : memref<32x512xf32, #tpu.memory_space<vmem>>, vector<32x32xf32>,
    %23 = vector.extract_strided_slice %10 {offsets = [192, 0], sizes = [32, 32], strides = [1, 1]} : vector<512x32xf32> to vector<32x32xf32>
    %c0_16 = arith.constant 0 : index
    %c192 = arith.constant 192 : index
    %24 = vector.load %arg14[%c0_16, %c192] : memref<32x512xf32, #tpu.memory_space<vmem>>, vector<32x32xf32>
    tpu.vector_store %arg14[%c0_16, %c192], %23 {strides = array<i32>} : memref<32x512xf32, #tpu.memory_space<vmem>>, vector<32x32xf32>,
    %25 = vector.extract_strided_slice %10 {offsets = [224, 0], sizes = [32, 32], strides = [1, 1]} : vector<512x32xf32> to vector<32x32xf32>
    %c0_17 = arith.constant 0 : index
    %c224 = arith.constant 224 : index
    %26 = vector.load %arg14[%c0_17, %c224] : memref<32x512xf32, #tpu.memory_space<vmem>>, vector<32x32xf32>
    tpu.vector_store %arg14[%c0_17, %c224], %25 {strides = array<i32>} : memref<32x512xf32, #tpu.memory_space<vmem>>, vector<32x32xf32>,
    %27 = vector.extract_strided_slice %10 {offsets = [256, 0], sizes = [32, 32], strides = [1, 1]} : vector<512x32xf32> to vector<32x32xf32>
    %c0_18 = arith.constant 0 : index
    %c256 = arith.constant 256 : index
    %28 = vector.load %arg14[%c0_18, %c256] : memref<32x512xf32, #tpu.memory_space<vmem>>, vector<32x32xf32>
    tpu.vector_store %arg14[%c0_18, %c256], %27 {strides = array<i32>} : memref<32x512xf32, #tpu.memory_space<vmem>>, vector<32x32xf32>,
    %29 = vector.extract_strided_slice %10 {offsets = [288, 0], sizes = [32, 32], strides = [1, 1]} : vector<512x32xf32> to vector<32x32xf32>
    %c0_19 = arith.constant 0 : index
    %c288 = arith.constant 288 : index
    %30 = vector.load %arg14[%c0_19, %c288] : memref<32x512xf32, #tpu.memory_space<vmem>>, vector<32x32xf32>
    tpu.vector_store %arg14[%c0_19, %c288], %29 {strides = array<i32>} : memref<32x512xf32, #tpu.memory_space<vmem>>, vector<32x32xf32>,
    %31 = vector.extract_strided_slice %10 {offsets = [320, 0], sizes = [32, 32], strides = [1, 1]} : vector<512x32xf32> to vector<32x32xf32>
    %c0_20 = arith.constant 0 : index
    %c320 = arith.constant 320 : index
    %32 = vector.load %arg14[%c0_20, %c320] : memref<32x512xf32, #tpu.memory_space<vmem>>, vector<32x32xf32>
    tpu.vector_store %arg14[%c0_20, %c320], %31 {strides = array<i32>} : memref<32x512xf32, #tpu.memory_space<vmem>>, vector<32x32xf32>,
    %33 = vector.extract_strided_slice %10 {offsets = [352, 0], sizes = [32, 32], strides = [1, 1]} : vector<512x32xf32> to vector<32x32xf32>
    %c0_21 = arith.constant 0 : index
    %c352 = arith.constant 352 : index
    %34 = vector.load %arg14[%c0_21, %c352] : memref<32x512xf32, #tpu.memory_space<vmem>>, vector<32x32xf32>
    tpu.vector_store %arg14[%c0_21, %c352], %33 {strides = array<i32>} : memref<32x512xf32, #tpu.memory_space<vmem>>, vector<32x32xf32>,
    %35 = vector.extract_strided_slice %10 {offsets = [384, 0], sizes = [32, 32], strides = [1, 1]} : vector<512x32xf32> to vector<32x32xf32>
    %c0_22 = arith.constant 0 : index
    %c384 = arith.constant 384 : index
    %36 = vector.load %arg14[%c0_22, %c384] : memref<32x512xf32, #tpu.memory_space<vmem>>, vector<32x32xf32>
    tpu.vector_store %arg14[%c0_22, %c384], %35 {strides = array<i32>} : memref<32x512xf32, #tpu.memory_space<vmem>>, vector<32x32xf32>,
    %37 = vector.extract_strided_slice %10 {offsets = [416, 0], sizes = [32, 32], strides = [1, 1]} : vector<512x32xf32> to vector<32x32xf32>
    %c0_23 = arith.constant 0 : index
    %c416 = arith.constant 416 : index
    %38 = vector.load %arg14[%c0_23, %c416] : memref<32x512xf32, #tpu.memory_space<vmem>>, vector<32x32xf32>
    tpu.vector_store %arg14[%c0_23, %c416], %37 {strides = array<i32>} : memref<32x512xf32, #tpu.memory_space<vmem>>, vector<32x32xf32>,
    %39 = vector.extract_strided_slice %10 {offsets = [448, 0], sizes = [32, 32], strides = [1, 1]} : vector<512x32xf32> to vector<32x32xf32>
    %c0_24 = arith.constant 0 : index
    %c448 = arith.constant 448 : index
    %40 = vector.load %arg14[%c0_24, %c448] : memref<32x512xf32, #tpu.memory_space<vmem>>, vector<32x32xf32>
    tpu.vector_store %arg14[%c0_24, %c448], %39 {strides = array<i32>} : memref<32x512xf32, #tpu.memory_space<vmem>>, vector<32x32xf32>,
    %41 = vector.extract_strided_slice %10 {offsets = [480, 0], sizes = [32, 32], strides = [1, 1]} : vector<512x32xf32> to vector<32x32xf32>
    %c0_25 = arith.constant 0 : index
    %c480 = arith.constant 480 : index
    %42 = vector.load %arg14[%c0_25, %c480] : memref<32x512xf32, #tpu.memory_space<vmem>>, vector<32x32xf32>
    tpu.vector_store %arg14[%c0_25, %c480], %41 {strides = array<i32>} : memref<32x512xf32, #tpu.memory_space<vmem>>, vector<32x32xf32>,
    %c0_26 = arith.constant 0 : index
    %c0_27 = arith.constant 0 : index
    %43 = vector.load %arg14[%c0_26, %c0_27] : memref<32x512xf32, #tpu.memory_space<vmem>>, vector<32x512xf32>
    %44 = arith.truncf %43 : vector<32x512xf32> to vector<32x512xbf16>
    %c0_28 = arith.constant 0 : index
    %c0_29 = arith.constant 0 : index
    %45 = vector.load %arg5[%c0_28, %c0_29] : memref<512x64xbf16, #tpu.memory_space<vmem>>, vector<512x64xbf16>
    %cst_30 = arith.constant dense<0.000000e+00> : vector<32x64xf32>
    %46 = tpu.matmul %44, %45, %cst_30 {dimension_numbers = #tpu.dot_dimension_numbers<[1], [0], [0], [1], [0, 0, 1, 1], [], []>} : vector<32x512xbf16>, vector<512x64xbf16>, vector<32x64xf32> -> vector<32x64xf32>
    %c0_31 = arith.constant 0 : index
    %c0_32 = arith.constant 0 : index
    %47 = vector.load %arg6[%c0_31, %c0_32] : memref<1x64xf32, #tpu.memory_space<vmem>>, vector<1x64xf32>
    %48 = vector.broadcast %47 : vector<1x64xf32> to vector<32x64xf32>
    %49 = arith.addf %46, %48 : vector<32x64xf32>
    %cst_33 = arith.constant 0.000000e+00 : f32
    %50 = vector.broadcast %cst_33 : f32 to vector<32x64xf32>
    %51 = arith.maximumf %49, %50 : vector<32x64xf32>
    %c0_34 = arith.constant 0 : index
    %c0_35 = arith.constant 0 : index
    %52 = vector.load %arg7[%c0_34, %c0_35] : memref<2x32xf32, #tpu.memory_space<vmem>>, vector<2x32xf32>
    %cst_36 = arith.constant dense<0.000000e+00> : vector<2x64xf32>
    %53 = tpu.matmul %52, %51, %cst_36 {dimension_numbers = #tpu.dot_dimension_numbers<[1], [0], [0], [1], [0, 0, 1, 1], [], []>} : vector<2x32xf32>, vector<32x64xf32>, vector<2x64xf32> -> vector<2x64xf32>
    %54 = arith.truncf %53 : vector<2x64xf32> to vector<2x64xbf16>
    %c0_37 = arith.constant 0 : index
    %c0_38 = arith.constant 0 : index
    %55 = vector.load %arg8[%c0_37, %c0_38] : memref<64x1024xbf16, #tpu.memory_space<vmem>>, vector<64x1024xbf16>
    %cst_39 = arith.constant dense<0.000000e+00> : vector<2x1024xf32>
    %56 = tpu.matmul %54, %55, %cst_39 {dimension_numbers = #tpu.dot_dimension_numbers<[1], [0], [0], [1], [0, 0, 1, 1], [], []>} : vector<2x64xbf16>, vector<64x1024xbf16>, vector<2x1024xf32> -> vector<2x1024xf32>
    %c0_40 = arith.constant 0 : index
    %c0_41 = arith.constant 0 : index
    %57 = vector.load %arg9[%c0_40, %c0_41] : memref<1x1024xf32, #tpu.memory_space<vmem>>, vector<1x1024xf32>
    %58 = vector.broadcast %57 : vector<1x1024xf32> to vector<2x1024xf32>
    %59 = arith.addf %56, %58 : vector<2x1024xf32>
    %60 = arith.truncf %59 : vector<2x1024xf32> to vector<2x1024xbf16>
    %c0_42 = arith.constant 0 : index
    %c0_43 = arith.constant 0 : index
    %61 = vector.load %arg10[%c0_42, %c0_43] : memref<1024x128xbf16, #tpu.memory_space<vmem>>, vector<1024x128xbf16>
    %cst_44 = arith.constant dense<0.000000e+00> : vector<2x128xf32>
    %62 = tpu.matmul %60, %61, %cst_44 {dimension_numbers = #tpu.dot_dimension_numbers<[1], [0], [0], [1], [0, 0, 1, 1], [], []>} : vector<2x1024xbf16>, vector<1024x128xbf16>, vector<2x128xf32> -> vector<2x128xf32>
    %c0_45 = arith.constant 0 : index
    %c0_46 = arith.constant 0 : index
    %63 = vector.load %arg11[%c0_45, %c0_46] : memref<1x128xf32, #tpu.memory_space<vmem>>, vector<1x128xf32>
    %64 = vector.broadcast %63 : vector<1x128xf32> to vector<2x128xf32>
    %65 = arith.addf %62, %64 : vector<2x128xf32>
    %66 = tpu.iota {dimensions = array<i32: 1>} : vector<2x128xi32>
    %c1_i32 = arith.constant 1 : i32
    %67 = vector.broadcast %c1_i32 : i32 to vector<2x128xi32>
    %68 = arith.cmpi sge, %66, %67 : vector<2x128xi32>
    %c9_i32 = arith.constant 9 : i32
    %69 = vector.broadcast %c9_i32 : i32 to vector<2x128xi32>
    %70 = arith.cmpi slt, %66, %69 : vector<2x128xi32>
    %71 = arith.andi %68, %70 : vector<2x128xi1>
    %cst_47 = arith.constant -1.000000e+30 : f32
    %72 = vector.broadcast %cst_47 : f32 to vector<2x128xf32>
    %73 = arith.select %71, %65, %72 : vector<2x128xi1>, vector<2x128xf32>
    %cst_48 = arith.constant dense<0xFF800000> : vector<2xf32>
    %74 = vector.multi_reduction <maximumf>, %73, %cst_48 [1] : vector<2x128xf32> to vector<2xf32>
    %75 = vector.shape_cast %74 : vector<2xf32> to vector<2x1xf32>
    %76 = vector.broadcast %75 : vector<2x1xf32> to vector<2x128xf32>
    %77 = arith.subf %73, %76 : vector<2x128xf32>
    %78 = math.exp %77 : vector<2x128xf32>
    %cst_49 = arith.constant 0.000000e+00 : f32
    %79 = vector.broadcast %cst_49 : f32 to vector<2x128xf32>
    %80 = arith.select %71, %78, %79 : vector<2x128xi1>, vector<2x128xf32>
    %cst_50 = arith.constant dense<0.000000e+00> : vector<2xf32>
    %81 = vector.multi_reduction <add>, %80, %cst_50 [1] : vector<2x128xf32> to vector<2xf32>
    %82 = vector.shape_cast %81 : vector<2xf32> to vector<2x1xf32>
    %83 = math.log %82 : vector<2x1xf32>
    %84 = arith.addf %83, %75 : vector<2x1xf32>
    %c0_51 = arith.constant 0 : index
    %c0_52 = arith.constant 0 : index
    %85 = vector.load %arg12[%c0_51, %c0_52] : memref<2x128xf32, #tpu.memory_space<vmem>>, vector<2x128xf32>
    %86 = arith.mulf %65, %85 : vector<2x128xf32>
    %cst_53 = arith.constant dense<0.000000e+00> : vector<2xf32>
    %87 = vector.multi_reduction <add>, %86, %cst_53 [1] : vector<2x128xf32> to vector<2xf32>
    %88 = vector.shape_cast %87 : vector<2xf32> to vector<2x1xf32>
    %89 = arith.subf %84, %88 : vector<2x1xf32>
    %c127_i32 = arith.constant 127 : i32
    %90 = vector.broadcast %c127_i32 : i32 to vector<2x128xi32>
    %91 = arith.cmpi eq, %66, %90 : vector<2x128xi32>
    %92 = vector.shape_cast %89 : vector<2x1xf32> to vector<2x1xf32>
    %93 = vector.broadcast %92 : vector<2x1xf32> to vector<2x128xf32>
    %94 = arith.select %91, %93, %65 : vector<2x128xi1>, vector<2x128xf32>
    %c0_54 = arith.constant 0 : index
    %c0_55 = arith.constant 0 : index
    %95 = vector.load %arg13[%c0_54, %c0_55] : memref<2x128xf32, #tpu.memory_space<vmem>>, vector<2x128xf32>
    tpu.vector_store %arg13[%c0_54, %c0_55], %94 {strides = array<i32>} : memref<2x128xf32, #tpu.memory_space<vmem>>, vector<2x128xf32>,
    return
  }
  func.func @transform_0(%arg0: i32) -> (i32, i32) {
    %c0_i32 = arith.constant 0 : i32
    %c0_i32_0 = arith.constant 0 : i32
    return %arg0, %c0_i32 : i32, i32
  }
  func.func @transform_1(%arg0: i32) -> (i32, i32) {
    %c0_i32 = arith.constant 0 : i32
    %c0_i32_0 = arith.constant 0 : i32
    %c0_i32_1 = arith.constant 0 : i32
    return %c0_i32, %c0_i32_0 : i32, i32
  }
  func.func @transform_2(%arg0: i32) -> (i32, i32) {
    %c0_i32 = arith.constant 0 : i32
    %c0_i32_0 = arith.constant 0 : i32
    %c0_i32_1 = arith.constant 0 : i32
    return %c0_i32, %c0_i32_0 : i32, i32
  }
  func.func @transform_3(%arg0: i32) -> (i32, i32) {
    %c0_i32 = arith.constant 0 : i32
    %c0_i32_0 = arith.constant 0 : i32
    %c0_i32_1 = arith.constant 0 : i32
    return %c0_i32, %c0_i32_0 : i32, i32
  }
  func.func @transform_4(%arg0: i32) -> (i32, i32) {
    %c0_i32 = arith.constant 0 : i32
    %c0_i32_0 = arith.constant 0 : i32
    %c0_i32_1 = arith.constant 0 : i32
    return %c0_i32, %c0_i32_0 : i32, i32
  }
  func.func @transform_5(%arg0: i32) -> (i32, i32) {
    %c0_i32 = arith.constant 0 : i32
    %c0_i32_0 = arith.constant 0 : i32
    %c0_i32_1 = arith.constant 0 : i32
    return %c0_i32, %c0_i32_0 : i32, i32
  }
  func.func @transform_6(%arg0: i32) -> (i32, i32) {
    %c0_i32 = arith.constant 0 : i32
    %c0_i32_0 = arith.constant 0 : i32
    %c0_i32_1 = arith.constant 0 : i32
    return %c0_i32, %c0_i32_0 : i32, i32
  }
  func.func @transform_7(%arg0: i32) -> (i32, i32) {
    %c0_i32 = arith.constant 0 : i32
    %c0_i32_0 = arith.constant 0 : i32
    %c0_i32_1 = arith.constant 0 : i32
    return %c0_i32, %c0_i32_0 : i32, i32
  }
  func.func @transform_8(%arg0: i32) -> (i32, i32) {
    %c0_i32 = arith.constant 0 : i32
    %c0_i32_0 = arith.constant 0 : i32
    %c0_i32_1 = arith.constant 0 : i32
    return %c0_i32, %c0_i32_0 : i32, i32
  }
  func.func @transform_9(%arg0: i32) -> (i32, i32) {
    %c0_i32 = arith.constant 0 : i32
    %c0_i32_0 = arith.constant 0 : i32
    %c0_i32_1 = arith.constant 0 : i32
    return %c0_i32, %c0_i32_0 : i32, i32
  }
  func.func @transform_10(%arg0: i32) -> (i32, i32) {
    %c0_i32 = arith.constant 0 : i32
    %c0_i32_0 = arith.constant 0 : i32
    %c0_i32_1 = arith.constant 0 : i32
    return %c0_i32, %c0_i32_0 : i32, i32
  }
  func.func @transform_11(%arg0: i32) -> (i32, i32) {
    %c0_i32 = arith.constant 0 : i32
    %c0_i32_0 = arith.constant 0 : i32
    return %arg0, %c0_i32 : i32, i32
  }
  func.func @transform_12(%arg0: i32) -> (i32, i32) {
    %c0_i32 = arith.constant 0 : i32
    %c0_i32_0 = arith.constant 0 : i32
    return %arg0, %c0_i32 : i32, i32
  }
}

</mosaic_0001>

<llo_original>
// kernel: ac_discriminator_forward.1
$region0: #{ac_discriminator_forward.1}
  #allocation0 [shape = 'u32[]', space=smem, size = 0x4, offset = 0x4, fixed_abs, tag = 'smem constant byte address 0x4 - core index']
  #allocation1 [shape = 'u32[144,128]{1,0:T(1,128)}', space=vmem, size = 0x12000, scoped, tag = 'internal scratch']
  #allocation2 [shape = 'f32[32,512]{1,0:T(8,128)}', space=vmem, size = 0x10000, scoped, tag = 'scratch operand']
  %s0 = inlined_call_operand.vmem [shape: bf16[128,48], index: 0, kind: input, shape index: {}]
  %s1 = inlined_call_operand.vmem [shape: bf16[48,32], index: 1, kind: input, shape index: {}]
  %s2 = inlined_call_operand.vmem [shape: f32[1,32], index: 2, kind: input, shape index: {}]
  %s3 = inlined_call_operand.vmem [shape: bf16[512,128], index: 3, kind: input, shape index: {}]
  %s4 = inlined_call_operand.vmem [shape: bf16[512,64], index: 4, kind: input, shape index: {}]
  %s5 = inlined_call_operand.vmem [shape: f32[1,64], index: 5, kind: input, shape index: {}]
  %s6 = inlined_call_operand.vmem [shape: f32[2,32], index: 6, kind: input, shape index: {}]
  %s7 = inlined_call_operand.vmem [shape: bf16[64,1024], index: 7, kind: input, shape index: {}]
  %s8 = inlined_call_operand.vmem [shape: f32[1,1024], index: 8, kind: input, shape index: {}]
  %s9 = inlined_call_operand.vmem [shape: bf16[1024,128], index: 9, kind: input, shape index: {}]
  %s10 = inlined_call_operand.vmem [shape: f32[1,128], index: 10, kind: input, shape index: {}]
  %s11 = inlined_call_operand.vmem [shape: f32[2,128], index: 11, kind: input, shape index: {}]
  %s12 = inlined_call_operand.vmem [shape: f32[2,128], index: 12, kind: output, shape index: {}]
  %s13 = sld [smem:[#allocation0]]
  $region58: #{ac_discriminator_forward.1} parent=0
    _
  %s15 = ssub.s32 1, %s13
  %s16 = scalar_select 0, %s15, %s13
  // Predicated region
  $region2: #{ac_discriminator_forward.1} parent=0 // pred_check
    _
  $region3: #{ac_discriminator_forward.1} parent=0 // pred_check_branch
    %18 = sbr.rel (0) target = $region5
  $region4: #{ac_discriminator_forward.1} parent=0 // pred_region
    _
  $region5: #{ac_discriminator_forward.1} parent=0 // pred_fallthru
    _
  // Predicated region
  $region6: #{ac_discriminator_forward.1} parent=0 // pred_check
    _
  $region7: #{ac_discriminator_forward.1} parent=0 // pred_check_branch
    %20 = sbr.rel (0) target = $region9
  $region8: #{ac_discriminator_forward.1} parent=0 // pred_region
    _
  $region9: #{ac_discriminator_forward.1} parent=0 // pred_fallthru
    _
  // Predicated region
  $region10: #{ac_discriminator_forward.1} parent=0 // pred_check
    _
  $region11: #{ac_discriminator_forward.1} parent=0 // pred_check_branch
    %22 = sbr.rel (0) target = $region13
  $region12: #{ac_discriminator_forward.1} parent=0 // pred_region
    _
  $region13: #{ac_discriminator_forward.1} parent=0 // pred_fallthru
    _
  // Predicated region
  $region14: #{ac_discriminator_forward.1} parent=0 // pred_check
    _
  $region15: #{ac_discriminator_forward.1} parent=0 // pred_check_branch
    %24 = sbr.rel (0) target = $region17
  $region16: #{ac_discriminator_forward.1} parent=0 // pred_region
    _
  $region17: #{ac_discriminator_forward.1} parent=0 // pred_fallthru
    _
  // Predicated region
  $region18: #{ac_discriminator_forward.1} parent=0 // pred_check
    _
  $region19: #{ac_discriminator_forward.1} parent=0 // pred_check_branch
    %26 = sbr.rel (0) target = $region21
  $region20: #{ac_discriminator_forward.1} parent=0 // pred_region
    _
  $region21: #{ac_discriminator_forward.1} parent=0 // pred_fallthru
    _
  // Predicated region
  $region22: #{ac_discriminator_forward.1} parent=0 // pred_check
    _
  $region23: #{ac_discriminator_forward.1} parent=0 // pred_check_branch
    %28 = sbr.rel (0) target = $region25
  $region24: #{ac_discriminator_forward.1} parent=0 // pred_region
    _
  $region25: #{ac_discriminator_forward.1} parent=0 // pred_fallthru
    _
  // Predicated region
  $region26: #{ac_discriminator_forward.1} parent=0 // pred_check
    _
  $region27: #{ac_discriminator_forward.1} parent=0 // pred_check_branch
    %30 = sbr.rel (0) target = $region29
  $region28: #{ac_discriminator_forward.1} parent=0 // pred_region
    _
  $region29: #{ac_discriminator_forward.1} parent=0 // pred_fallthru
    _
  // Predicated region
  $region30: #{ac_discriminator_forward.1} parent=0 // pred_check
    _
  $region31: #{ac_discriminator_forward.1} parent=0 // pred_check_branch
    %32 = sbr.rel (0) target = $region33
  $region32: #{ac_discriminator_forward.1} parent=0 // pred_region
    _
  $region33: #{ac_discriminator_forward.1} parent=0 // pred_fallthru
    _
  // Predicated region
  $region34: #{ac_discriminator_forward.1} parent=0 // pred_check
    _
  $region35: #{ac_discriminator_forward.1} parent=0 // pred_check_branch
    %34 = sbr.rel (0) target = $region37
  $region36: #{ac_discriminator_forward.1} parent=0 // pred_region
    _
  $region37: #{ac_discriminator_forward.1} parent=0 // pred_fallthru
    _
  // Predicated region
  $region38: #{ac_discriminator_forward.1} parent=0 // pred_check
    _
  $region39: #{ac_discriminator_forward.1} parent=0 // pred_check_branch
    %36 = sbr.rel (0) target = $region41
  $region40: #{ac_discriminator_forward.1} parent=0 // pred_region
    _
  $region41: #{ac_discriminator_forward.1} parent=0 // pred_fallthru
    _
  // Predicated region
  $region42: #{ac_discriminator_forward.1} parent=0 // pred_check
    _
  $region43: #{ac_discriminator_forward.1} parent=0 // pred_check_branch
    %38 = sbr.rel (0) target = $region45
  $region44: #{ac_discriminator_forward.1} parent=0 // pred_region
    _
  $region45: #{ac_discriminator_forward.1} parent=0 // pred_fallthru
    _
  // Predicated region
  $region46: #{ac_discriminator_forward.1} parent=0 // pred_check
    _
  $region47: #{ac_discriminator_forward.1} parent=0 // pred_check_branch
    %40 = sbr.rel (0) target = $region49
  $region48: #{ac_discriminator_forward.1} parent=0 // pred_region
    _
  $region49: #{ac_discriminator_forward.1} parent=0 // pred_fallthru
    _
  %v42 = vld [vmem:[%s0] sm:$0xf]
  %v43 = vld [vmem:[%s0 + $0x4] sm:$0xf]
  %v44 = vld [vmem:[%s0 + $0x8] sm:$0xf]
  %v45 = vld [vmem:[%s0 + $0xc] sm:$0xf]
  %v46 = vld [vmem:[%s0 + $0x10] sm:$0xf]
  %v47 = vld [vmem:[%s0 + $0x14] sm:$0xf]
  %v48 = vld [vmem:[%s0 + $0x18] sm:$0xf]
  %v49 = vld [vmem:[%s0 + $0x1c] sm:$0xf]
  %v50 = vld [vmem:[%s0 + $0x20] sm:$0xf]
  %v51 = vld [vmem:[%s0 + $0x24] sm:$0xf]
  %v52 = vld [vmem:[%s0 + $0x28] sm:$0xf]
  %v53 = vld [vmem:[%s0 + $0x2c] sm:$0xf]
  %v54 = vld [vmem:[%s0 + $0x30] sm:$0xf]
  %v55 = vld [vmem:[%s0 + $0x34] sm:$0xf]
  %v56 = vld [vmem:[%s0 + $0x38] sm:$0xf]
  %v57 = vld [vmem:[%s0 + $0x3c] sm:$0xf]
  %v58 = vld [vmem:[%s1] sm:$0xf]
  %v59 = vld [vmem:[%s1 + $0x4] sm:$0xf]
  %v60 = vld [vmem:[%s1 + $0x8] sm:$0xf]
  %v61 = vld [vmem:[%s1 + $0xc] sm:$0xf]
  %v62 = vld [vmem:[%s1 + $0x10] sm:$0xf]
  %v63 = vld [vmem:[%s1 + $0x14] sm:$0xf]
  %v64 = vld [vmem:[%s2] sm:$0x1]
  %v66 = vlaneseq
  %v67 = vshrl.u32 %v66, 7
  %v68 = vsub.s32 0, %v67
  %v69 = vrot.slane %v64, %v68
  %v87 = vunpack.c.l.b16 %v42
  %v88 = vunpack.c.l.b16 %v43
  %v89 = vunpack.c.l.b16 %v44
  %v90 = vunpack.c.l.b16 %v45
  %v91 = vunpack.c.l.b16 %v46
  %v92 = vunpack.c.l.b16 %v47
  %v93 = vunpack.c.l.b16 %v48
  %v94 = vunpack.c.l.b16 %v49
  %v95 = vunpack.c.l.b16 %v50
  %v96 = vunpack.c.l.b16 %v51
  %v97 = vunpack.c.l.b16 %v52
  %v98 = vunpack.c.l.b16 %v53
  %v99 = vunpack.c.l.b16 %v54
  %v100 = vunpack.c.l.b16 %v55
  %v101 = vunpack.c.l.b16 %v56
  %v102 = vunpack.c.l.b16 %v57
  %v103 = vpack.c.b16 %v88, %v87
  %v104 = vpack.c.b16 %v90, %v89
  %v105 = vpack.c.b16 %v92, %v91
  %v106 = vpack.c.b16 %v94, %v93
  %v107 = vpack.c.b16 %v96, %v95
  %v108 = vpack.c.b16 %v98, %v97
  %v109 = vpack.c.b16 %v100, %v99
  %v110 = vpack.c.b16 %v102, %v101
  %v117 = vunpack.c.l.b16 %v58
  %v118 = vunpack.c.l.b16 %v59
  %v119 = vunpack.c.l.b16 %v60
  %v120 = vunpack.c.l.b16 %v61
  %v121 = vunpack.c.l.b16 %v62
  %v122 = vunpack.c.l.b16 %v63
  %v123 = vpack.c.b16 %v118, %v117
  %v124 = vpack.c.b16 %v120, %v119
  %v125 = vpack.c.b16 %v122, %v121
  %vm129 = vcmask 392192
  %v131 = vsel %vm129, %v103, 0
  %v134 = vsel %vm129, %v104, 0
  %v137 = vsel %vm129, %v105, 0
  %v140 = vsel %vm129, %v106, 0
  %v143 = vsel %vm129, %v107, 0
  %v146 = vsel %vm129, %v108, 0
  %v149 = vsel %vm129, %v109, 0
  %v152 = vsel %vm129, %v110, 0
  %154 = vmatprep.subr.bf16.mxu0 0
  %155 = vmatpush1.bf16.msra.mxu0 0
  %156 = vmatprep.subr.bf16.mxu0 0
  %157 = vmatpush1.bf16.msra.mxu0 0
  %158 = vmatprep.subr.bf16.mxu0 0
  %159 = vmatpush1.bf16.msra.mxu0 0
  %160 = vmatprep.subr.bf16.mxu0 0
  %161 = vmatpush1.bf16.msra.mxu0 0
  %162 = vmatprep.subr.bf16.mxu0 0
  %163 = vmatpush1.bf16.msra.mxu0 0
  %164 = vmatprep.subr.bf16.mxu0 0
  %165 = vmatpush1.bf16.msra.mxu0 %v125
  %166 = vmatprep.subr.bf16.mxu0 0
  %167 = vmatpush1.bf16.msra.mxu0 %v124
  %168 = vmatprep.subr.bf16.mxu0 0
  %169 = vmatpush1.bf16.msra.mxu0 %v123
  %170 = vmatprep.subr.bf16.mxu0 0
  %171 = vmatpush2.bf16.msra.mxu0 0
  %172 = vmatprep.subr.bf16.mxu0 0
  %173 = vmatpush2.bf16.msra.mxu0 0
  %174 = vmatprep.subr.bf16.mxu0 0
  %175 = vmatpush2.bf16.msra.mxu0 0
  %176 = vmatprep.subr.bf16.mxu0 0
  %177 = vmatpush2.bf16.msra.mxu0 0
  %178 = vmatprep.subr.bf16.mxu0 0
  %179 = vmatpush2.bf16.msra.mxu0 0
  %180 = vmatprep.subr.bf16.mxu0 0
  %181 = vmatpush2.bf16.msra.mxu0 0
  %182 = vmatprep.subr.bf16.mxu0 0
  %183 = vmatpush2.bf16.msra.mxu0 0
  %184 = vmatprep.subr.bf16.mxu0 0
  %185 = vmatpush2.bf16.msra.mxu0 0
  %186 = vmatprep.mubr.bf16.mxu0 0
  %187 = vmatmul.mubr.bf16.gmra.mxu0 %v131
  %v188 = vpop.f32.mrf.mxu0
  %v189 = vadd.f32 %v69, %v188
  %v190 = vpop.f32.mrf.mxu0
  %v191 = vpop.f32.mrf.mxu0
  %v192 = vadd.f32 %v69, %v191
  %v193 = vpop.f32.mrf.mxu0
  %194 = vmatprep.mubr.bf16.mxu0 0
  %195 = vmatmul.mubr.bf16.gmra.mxu0 %v134
  %v196 = vpop.f32.mrf.mxu0
  %v197 = vadd.f32 %v69, %v196
  %v198 = vpop.f32.mrf.mxu0
  %v199 = vpop.f32.mrf.mxu0
  %v200 = vadd.f32 %v69, %v199
  %v201 = vpop.f32.mrf.mxu0
  %202 = vmatprep.mubr.bf16.mxu0 0
  %203 = vmatmul.mubr.bf16.gmra.mxu0 %v137
  %v204 = vpop.f32.mrf.mxu0
  %v205 = vadd.f32 %v69, %v204
  %v206 = vpop.f32.mrf.mxu0
  %v207 = vpop.f32.mrf.mxu0
  %v208 = vadd.f32 %v69, %v207
  %v209 = vpop.f32.mrf.mxu0
  %210 = vmatprep.mubr.bf16.mxu0 0
  %211 = vmatmul.mubr.bf16.gmra.mxu0 %v140
  %v212 = vpop.f32.mrf.mxu0
  %v213 = vadd.f32 %v69, %v212
  %v214 = vpop.f32.mrf.mxu0
  %v215 = vpop.f32.mrf.mxu0
  %v216 = vadd.f32 %v69, %v215
  %v217 = vpop.f32.mrf.mxu0
  %218 = vmatprep.mubr.bf16.mxu0 0
  %219 = vmatmul.mubr.bf16.gmra.mxu0 %v143
  %v220 = vpop.f32.mrf.mxu0
  %v221 = vadd.f32 %v69, %v220
  %v222 = vpop.f32.mrf.mxu0
  %v223 = vpop.f32.mrf.mxu0
  %v224 = vadd.f32 %v69, %v223
  %v225 = vpop.f32.mrf.mxu0
  %226 = vmatprep.mubr.bf16.mxu0 0
  %227 = vmatmul.mubr.bf16.gmra.mxu0 %v146
  %v228 = vpop.f32.mrf.mxu0
  %v229 = vadd.f32 %v69, %v228
  %v230 = vpop.f32.mrf.mxu0
  %v231 = vpop.f32.mrf.mxu0
  %v232 = vadd.f32 %v69, %v231
  %v233 = vpop.f32.mrf.mxu0
  %234 = vmatprep.mubr.bf16.mxu0 0
  %235 = vmatmul.mubr.bf16.gmra.mxu0 %v149
  %v236 = vpop.f32.mrf.mxu0
  %v237 = vadd.f32 %v69, %v236
  %v238 = vpop.f32.mrf.mxu0
  %v239 = vpop.f32.mrf.mxu0
  %v240 = vadd.f32 %v69, %v239
  %v241 = vpop.f32.mrf.mxu0
  %242 = vmatprep.mubr.bf16.mxu0 0
  %243 = vmatmul.mubr.bf16.gmra.mxu0 %v152
  %v244 = vpop.f32.mrf.mxu0
  %v245 = vadd.f32 %v69, %v244
  %v246 = vpop.f32.mrf.mxu0
  %v247 = vpop.f32.mrf.mxu0
  %v248 = vadd.f32 %v69, %v247
  %v249 = vpop.f32.mrf.mxu0
  %250 = vdwg.mxu0
  %v251 = vmax.f32 %v189, 0.0
  %v252 = vmax.f32 %v192, 0.0
  %v253 = vmax.f32 %v197, 0.0
  %v254 = vmax.f32 %v200, 0.0
  %v255 = vmax.f32 %v205, 0.0
  %v256 = vmax.f32 %v208, 0.0
  %v257 = vmax.f32 %v213, 0.0
  %v258 = vmax.f32 %v216, 0.0
  %v259 = vmax.f32 %v221, 0.0
  %v260 = vmax.f32 %v224, 0.0
  %v261 = vmax.f32 %v229, 0.0
  %v262 = vmax.f32 %v232, 0.0
  %v263 = vmax.f32 %v237, 0.0
  %v264 = vmax.f32 %v240, 0.0
  %v265 = vmax.f32 %v245, 0.0
  %v266 = vmax.f32 %v248, 0.0
  %v267 = vpack.c.bf16 %v252, %v251
  %v268 = vpack.c.bf16 %v254, %v253
  %v269 = vpack.c.bf16 %v256, %v255
  %v270 = vpack.c.bf16 %v258, %v257
  %v271 = vpack.c.bf16 %v260, %v259
  %v272 = vpack.c.bf16 %v262, %v261
  %v273 = vpack.c.bf16 %v264, %v263
  %v274 = vpack.c.bf16 %v266, %v265
  %v275 = vld [vmem:[%s3] sm:$0xf]
  %v276 = vld [vmem:[%s3 + $0x4] sm:$0xf]
  %v277 = vld [vmem:[%s3 + $0x8] sm:$0xf]
  %v278 = vld [vmem:[%s3 + $0xc] sm:$0xf]
  %v279 = vld [vmem:[%s3 + $0x10] sm:$0xf]
  %v280 = vld [vmem:[%s3 + $0x14] sm:$0xf]
  %v281 = vld [vmem:[%s3 + $0x18] sm:$0xf]
  %v282 = vld [vmem:[%s3 + $0x1c] sm:$0xf]
  %v283 = vld [vmem:[%s3 + $0x20] sm:$0xf]
  %v284 = vld [vmem:[%s3 + $0x24] sm:$0xf]
  %v285 = vld [vmem:[%s3 + $0x28] sm:$0xf]
  %v286 = vld [vmem:[%s3 + $0x2c] sm:$0xf]
  %v287 = vld [vmem:[%s3 + $0x30] sm:$0xf]
  %v288 = vld [vmem:[%s3 + $0x34] sm:$0xf]
  %v289 = vld [vmem:[%s3 + $0x38] sm:$0xf]
  %v290 = vld [vmem:[%s3 + $0x3c] sm:$0xf]
  %v291 = vld [vmem:[%s3 + $0x40] sm:$0xf]
  %v292 = vld [vmem:[%s3 + $0x44] sm:$0xf]
  %v293 = vld [vmem:[%s3 + $0x48] sm:$0xf]
  %v294 = vld [vmem:[%s3 + $0x4c] sm:$0xf]
  %v295 = vld [vmem:[%s3 + $0x50] sm:$0xf]
  %v296 = vld [vmem:[%s3 + $0x54] sm:$0xf]
  %v297 = vld [vmem:[%s3 + $0x58] sm:$0xf]
  %v298 = vld [vmem:[%s3 + $0x5c] sm:$0xf]
  %v299 = vld [vmem:[%s3 + $0x60] sm:$0xf]
  %v300 = vld [vmem:[%s3 + $0x64] sm:$0xf]
  %v301 = vld [vmem:[%s3 + $0x68] sm:$0xf]
  %v302 = vld [vmem:[%s3 + $0x6c] sm:$0xf]
  %v303 = vld [vmem:[%s3 + $0x70] sm:$0xf]
  %v304 = vld [vmem:[%s3 + $0x74] sm:$0xf]
  %v305 = vld [vmem:[%s3 + $0x78] sm:$0xf]
  %v306 = vld [vmem:[%s3 + $0x7c] sm:$0xf]
  %v307 = vld [vmem:[%s3 + $0x80] sm:$0xf]
  %v308 = vld [vmem:[%s3 + $0x84] sm:$0xf]
  %v309 = vld [vmem:[%s3 + $0x88] sm:$0xf]
  %v310 = vld [vmem:[%s3 + $0x8c] sm:$0xf]
  %v311 = vld [vmem:[%s3 + $0x90] sm:$0xf]
  %v312 = vld [vmem:[%s3 + $0x94] sm:$0xf]
  %v313 = vld [vmem:[%s3 + $0x98] sm:$0xf]
  %v314 = vld [vmem:[%s3 + $0x9c] sm:$0xf]
  %v315 = vld [vmem:[%s3 + $0xa0] sm:$0xf]
  %v316 = vld [vmem:[%s3 + $0xa4] sm:$0xf]
  %v317 = vld [vmem:[%s3 + $0xa8] sm:$0xf]
  %v318 = vld [vmem:[%s3 + $0xac] sm:$0xf]
  %v319 = vld [vmem:[%s3 + $0xb0] sm:$0xf]
  %v320 = vld [vmem:[%s3 + $0xb4] sm:$0xf]
  %v321 = vld [vmem:[%s3 + $0xb8] sm:$0xf]
  %v322 = vld [vmem:[%s3 + $0xbc] sm:$0xf]
  %v323 = vld [vmem:[%s3 + $0xc0] sm:$0xf]
  %v324 = vld [vmem:[%s3 + $0xc4] sm:$0xf]
  %v325 = vld [vmem:[%s3 + $0xc8] sm:$0xf]
  %v326 = vld [vmem:[%s3 + $0xcc] sm:$0xf]
  %v327 = vld [vmem:[%s3 + $0xd0] sm:$0xf]
  %v328 = vld [vmem:[%s3 + $0xd4] sm:$0xf]
  %v329 = vld [vmem:[%s3 + $0xd8] sm:$0xf]
  %v330 = vld [vmem:[%s3 + $0xdc] sm:$0xf]
  %v331 = vld [vmem:[%s3 + $0xe0] sm:$0xf]
  %v332 = vld [vmem:[%s3 + $0xe4] sm:$0xf]
  %v333 = vld [vmem:[%s3 + $0xe8] sm:$0xf]
  %v334 = vld [vmem:[%s3 + $0xec] sm:$0xf]
  %v335 = vld [vmem:[%s3 + $0xf0] sm:$0xf]
  %v336 = vld [vmem:[%s3 + $0xf4] sm:$0xf]
  %v337 = vld [vmem:[%s3 + $0xf8] sm:$0xf]
  %v338 = vld [vmem:[%s3 + $0xfc] sm:$0xf]
  %v403 = vunpack.c.l.b16 %v275
  %v404 = vunpack.c.l.b16 %v276
  %v405 = vunpack.c.l.b16 %v277
  %v406 = vunpack.c.l.b16 %v278
  %v407 = vunpack.c.l.b16 %v279
  %v408 = vunpack.c.l.b16 %v280
  %v409 = vunpack.c.l.b16 %v281
  %v410 = vunpack.c.l.b16 %v282
  %v411 = vunpack.c.l.b16 %v283
  %v412 = vunpack.c.l.b16 %v284
  %v413 = vunpack.c.l.b16 %v285
  %v414 = vunpack.c.l.b16 %v286
  %v415 = vunpack.c.l.b16 %v287
  %v416 = vunpack.c.l.b16 %v288
  %v417 = vunpack.c.l.b16 %v289
  %v418 = vunpack.c.l.b16 %v290
  %v419 = vunpack.c.l.b16 %v291
  %v420 = vunpack.c.l.b16 %v292
  %v421 = vunpack.c.l.b16 %v293
  %v422 = vunpack.c.l.b16 %v294
  %v423 = vunpack.c.l.b16 %v295
  %v424 = vunpack.c.l.b16 %v296
  %v425 = vunpack.c.l.b16 %v297
  %v426 = vunpack.c.l.b16 %v298
  %v427 = vunpack.c.l.b16 %v299
  %v428 = vunpack.c.l.b16 %v300
  %v429 = vunpack.c.l.b16 %v301
  %v430 = vunpack.c.l.b16 %v302
  %v431 = vunpack.c.l.b16 %v303
  %v432 = vunpack.c.l.b16 %v304
  %v433 = vunpack.c.l.b16 %v305
  %v434 = vunpack.c.l.b16 %v306
  %v435 = vunpack.c.l.b16 %v307
  %v436 = vunpack.c.l.b16 %v308
  %v437 = vunpack.c.l.b16 %v309
  %v438 = vunpack.c.l.b16 %v310
  %v439 = vunpack.c.l.b16 %v311
  %v440 = vunpack.c.l.b16 %v312
  %v441 = vunpack.c.l.b16 %v313
  %v442 = vunpack.c.l.b16 %v314
  %v443 = vunpack.c.l.b16 %v315
  %v444 = vunpack.c.l.b16 %v316
  %v445 = vunpack.c.l.b16 %v317
  %v446 = vunpack.c.l.b16 %v318
  %v447 = vunpack.c.l.b16 %v319
  %v448 = vunpack.c.l.b16 %v320
  %v449 = vunpack.c.l.b16 %v321
  %v450 = vunpack.c.l.b16 %v322
  %v451 = vunpack.c.l.b16 %v323
  %v452 = vunpack.c.l.b16 %v324
  %v453 = vunpack.c.l.b16 %v325
  %v454 = vunpack.c.l.b16 %v326
  %v455 = vunpack.c.l.b16 %v327
  %v456 = vunpack.c.l.b16 %v328
  %v457 = vunpack.c.l.b16 %v329
  %v458 = vunpack.c.l.b16 %v330
  %v459 = vunpack.c.l.b16 %v331
  %v460 = vunpack.c.l.b16 %v332
  %v461 = vunpack.c.l.b16 %v333
  %v462 = vunpack.c.l.b16 %v334
  %v463 = vunpack.c.l.b16 %v335
  %v464 = vunpack.c.l.b16 %v336
  %v465 = vunpack.c.l.b16 %v337
  %v466 = vunpack.c.l.b16 %v338
  %v467 = vpack.c.b16 %v404, %v403
  %v468 = vpack.c.b16 %v406, %v405
  %v469 = vpack.c.b16 %v408, %v407
  %v470 = vpack.c.b16 %v410, %v409
  %v471 = vpack.c.b16 %v412, %v411
  %v472 = vpack.c.b16 %v414, %v413
  %v473 = vpack.c.b16 %v416, %v415
  %v474 = vpack.c.b16 %v418, %v417
  %v475 = vpack.c.b16 %v420, %v419
  %v476 = vpack.c.b16 %v422, %v421
  %v477 = vpack.c.b16 %v424, %v423
  %v478 = vpack.c.b16 %v426, %v425
  %v479 = vpack.c.b16 %v428, %v427
  %v480 = vpack.c.b16 %v430, %v429
  %v481 = vpack.c.b16 %v432, %v431
  %v482 = vpack.c.b16 %v434, %v433
  %v483 = vpack.c.b16 %v436, %v435
  %v484 = vpack.c.b16 %v438, %v437
  %v485 = vpack.c.b16 %v440, %v439
  %v486 = vpack.c.b16 %v442, %v441
  %v487 = vpack.c.b16 %v444, %v443
  %v488 = vpack.c.b16 %v446, %v445
  %v489 = vpack.c.b16 %v448, %v447
  %v490 = vpack.c.b16 %v450, %v449
  %v491 = vpack.c.b16 %v452, %v451
  %v492 = vpack.c.b16 %v454, %v453
  %v493 = vpack.c.b16 %v456, %v455
  %v494 = vpack.c.b16 %v458, %v457
  %v495 = vpack.c.b16 %v460, %v459
  %v496 = vpack.c.b16 %v462, %v461
  %v497 = vpack.c.b16 %v464, %v463
  %v498 = vpack.c.b16 %v466, %v465
  %531 = vmatprep.subr.bf16.mxu0 0
  %532 = vmatpush1.bf16.msra.mxu0 %v274
  %533 = vmatprep.subr.bf16.mxu0 0
  %534 = vmatpush1.bf16.msra.mxu0 %v273
  %535 = vmatprep.subr.bf16.mxu0 0
  %536 = vmatpush1.bf16.msra.mxu0 %v272
  %537 = vmatprep.subr.bf16.mxu0 0
  %538 = vmatpush1.bf16.msra.mxu0 %v271
  %539 = vmatprep.subr.bf16.mxu0 0
  %540 = vmatpush1.bf16.msra.mxu0 %v270
  %541 = vmatprep.subr.bf16.mxu0 0
  %542 = vmatpush1.bf16.msra.mxu0 %v269
  %543 = vmatprep.subr.bf16.mxu0 0
  %544 = vmatpush1.bf16.msra.mxu0 %v268
  %545 = vmatprep.subr.bf16.mxu0 0
  %546 = vmatpush1.bf16.msra.mxu0 %v267
  %547 = vmatprep.subr.bf16.mxu0 0
  %548 = vmatpush2.bf16.msra.mxu0 0
  %549 = vmatprep.subr.bf16.mxu0 0
  %550 = vmatpush2.bf16.msra.mxu0 0
  %551 = vmatprep.subr.bf16.mxu0 0
  %552 = vmatpush2.bf16.msra.mxu0 0
  %553 = vmatprep.subr.bf16.mxu0 0
  %554 = vmatpush2.bf16.msra.mxu0 0
  %555 = vmatprep.subr.bf16.mxu0 0
  %556 = vmatpush2.bf16.msra.mxu0 0
  %557 = vmatprep.subr.bf16.mxu0 0
  %558 = vmatpush2.bf16.msra.mxu0 0
  %559 = vmatprep.subr.bf16.mxu0 0
  %560 = vmatpush2.bf16.msra.mxu0 0
  %561 = vmatprep.subr.bf16.mxu0 0
  %562 = vmatpush2.bf16.msra.mxu0 0
  %563 = vmatprep.mubr.bf16.mxu0 0
  %564 = vmatmul.mubr.bf16.gmra.mxu0 %v467
  %v565 = vpop.f32.mrf.mxu0
  %v566 = vadd.f32 0.0, %v565
  %v567 = vpop.f32.mrf.mxu0
  %v568 = vpop.f32.mrf.mxu0
  %v569 = vadd.f32 0.0, %v568
  %v570 = vpop.f32.mrf.mxu0
  %571 = vmatprep.mubr.bf16.mxu0 0
  %572 = vmatmul.mubr.bf16.gmra.mxu0 %v468
  %v573 = vpop.f32.mrf.mxu0
  %v574 = vadd.f32 0.0, %v573
  %v575 = vpop.f32.mrf.mxu0
  %v576 = vpop.f32.mrf.mxu0
  %v577 = vadd.f32 0.0, %v576
  %v578 = vpop.f32.mrf.mxu0
  %579 = vmatprep.mubr.bf16.mxu0 0
  %580 = vmatmul.mubr.bf16.gmra.mxu0 %v469
  %v581 = vpop.f32.mrf.mxu0
  %v582 = vadd.f32 0.0, %v581
  %v583 = vpop.f32.mrf.mxu0
  %v584 = vpop.f32.mrf.mxu0
  %v585 = vadd.f32 0.0, %v584
  %v586 = vpop.f32.mrf.mxu0
  %587 = vmatprep.mubr.bf16.mxu0 0
  %588 = vmatmul.mubr.bf16.gmra.mxu0 %v470
  %v589 = vpop.f32.mrf.mxu0
  %v590 = vadd.f32 0.0, %v589
  %v591 = vpop.f32.mrf.mxu0
  %v592 = vpop.f32.mrf.mxu0
  %v593 = vadd.f32 0.0, %v592
  %v594 = vpop.f32.mrf.mxu0
  %595 = vmatprep.mubr.bf16.mxu0 0
  %596 = vmatmul.mubr.bf16.gmra.mxu0 %v471
  %v597 = vpop.f32.mrf.mxu0
  %v598 = vadd.f32 0.0, %v597
  %v599 = vpop.f32.mrf.mxu0
  %v600 = vpop.f32.mrf.mxu0
  %v601 = vadd.f32 0.0, %v600
  %v602 = vpop.f32.mrf.mxu0
  %603 = vmatprep.mubr.bf16.mxu0 0
  %604 = vmatmul.mubr.bf16.gmra.mxu0 %v472
  %v605 = vpop.f32.mrf.mxu0
  %v606 = vadd.f32 0.0, %v605
  %v607 = vpop.f32.mrf.mxu0
  %v608 = vpop.f32.mrf.mxu0
  %v609 = vadd.f32 0.0, %v608
  %v610 = vpop.f32.mrf.mxu0
  %611 = vmatprep.mubr.bf16.mxu0 0
  %612 = vmatmul.mubr.bf16.gmra.mxu0 %v473
  %v613 = vpop.f32.mrf.mxu0
  %v614 = vadd.f32 0.0, %v613
  %v615 = vpop.f32.mrf.mxu0
  %v616 = vpop.f32.mrf.mxu0
  %v617 = vadd.f32 0.0, %v616
  %v618 = vpop.f32.mrf.mxu0
  %619 = vmatprep.mubr.bf16.mxu0 0
  %620 = vmatmul.mubr.bf16.gmra.mxu0 %v474
  %v621 = vpop.f32.mrf.mxu0
  %v622 = vadd.f32 0.0, %v621
  %v623 = vpop.f32.mrf.mxu0
  %v624 = vpop.f32.mrf.mxu0
  %v625 = vadd.f32 0.0, %v624
  %v626 = vpop.f32.mrf.mxu0
  %627 = vmatprep.mubr.bf16.mxu0 0
  %628 = vmatmul.mubr.bf16.gmra.mxu0 %v475
  %v629 = vpop.f32.mrf.mxu0
  %v630 = vadd.f32 0.0, %v629
  %v631 = vpop.f32.mrf.mxu0
  %v632 = vpop.f32.mrf.mxu0
  %v633 = vadd.f32 0.0, %v632
  %v634 = vpop.f32.mrf.mxu0
  %635 = vmatprep.mubr.bf16.mxu0 0
  %636 = vmatmul.mubr.bf16.gmra.mxu0 %v476
  %v637 = vpop.f32.mrf.mxu0
  %v638 = vadd.f32 0.0, %v637
  %v639 = vpop.f32.mrf.mxu0
  %v640 = vpop.f32.mrf.mxu0
  %v641 = vadd.f32 0.0, %v640
  %v642 = vpop.f32.mrf.mxu0
  %643 = vmatprep.mubr.bf16.mxu0 0
  %644 = vmatmul.mubr.bf16.gmra.mxu0 %v477
  %v645 = vpop.f32.mrf.mxu0
  %v646 = vadd.f32 0.0, %v645
  %v647 = vpop.f32.mrf.mxu0
  %v648 = vpop.f32.mrf.mxu0
  %v649 = vadd.f32 0.0, %v648
  %v650 = vpop.f32.mrf.mxu0
  %651 = vmatprep.mubr.bf16.mxu0 0
  %652 = vmatmul.mubr.bf16.gmra.mxu0 %v478
  %v653 = vpop.f32.mrf.mxu0
  %v654 = vadd.f32 0.0, %v653
  %v655 = vpop.f32.mrf.mxu0
  %v656 = vpop.f32.mrf.mxu0
  %v657 = vadd.f32 0.0, %v656
  %v658 = vpop.f32.mrf.mxu0
  %659 = vmatprep.mubr.bf16.mxu0 0
  %660 = vmatmul.mubr.bf16.gmra.mxu0 %v479
  %v661 = vpop.f32.mrf.mxu0
  %v662 = vadd.f32 0.0, %v661
  %v663 = vpop.f32.mrf.mxu0
  %v664 = vpop.f32.mrf.mxu0
  %v665 = vadd.f32 0.0, %v664
  %v666 = vpop.f32.mrf.mxu0
  %667 = vmatprep.mubr.bf16.mxu0 0
  %668 = vmatmul.mubr.bf16.gmra.mxu0 %v480
  %v669 = vpop.f32.mrf.mxu0
  %v670 = vadd.f32 0.0, %v669
  %v671 = vpop.f32.mrf.mxu0
  %v672 = vpop.f32.mrf.mxu0
  %v673 = vadd.f32 0.0, %v672
  %v674 = vpop.f32.mrf.mxu0
  %675 = vmatprep.mubr.bf16.mxu0 0
  %676 = vmatmul.mubr.bf16.gmra.mxu0 %v481
  %v677 = vpop.f32.mrf.mxu0
  %v678 = vadd.f32 0.0, %v677
  %v679 = vpop.f32.mrf.mxu0
  %v680 = vpop.f32.mrf.mxu0
  %v681 = vadd.f32 0.0, %v680
  %v682 = vpop.f32.mrf.mxu0
  %683 = vmatprep.mubr.bf16.mxu0 0
  %684 = vmatmul.mubr.bf16.gmra.mxu0 %v482
  %v685 = vpop.f32.mrf.mxu0
  %v686 = vadd.f32 0.0, %v685
  %v687 = vpop.f32.mrf.mxu0
  %v688 = vpop.f32.mrf.mxu0
  %v689 = vadd.f32 0.0, %v688
  %v690 = vpop.f32.mrf.mxu0
  %691 = vmatprep.mubr.bf16.mxu0 0
  %692 = vmatmul.mubr.bf16.gmra.mxu0 %v483
  %v693 = vpop.f32.mrf.mxu0
  %v694 = vadd.f32 0.0, %v693
  %v695 = vpop.f32.mrf.mxu0
  %v696 = vpop.f32.mrf.mxu0
  %v697 = vadd.f32 0.0, %v696
  %v698 = vpop.f32.mrf.mxu0
  %699 = vmatprep.mubr.bf16.mxu0 0
  %700 = vmatmul.mubr.bf16.gmra.mxu0 %v484
  %v701 = vpop.f32.mrf.mxu0
  %v702 = vadd.f32 0.0, %v701
  %v703 = vpop.f32.mrf.mxu0
  %v704 = vpop.f32.mrf.mxu0
  %v705 = vadd.f32 0.0, %v704
  %v706 = vpop.f32.mrf.mxu0
  %707 = vmatprep.mubr.bf16.mxu0 0
  %708 = vmatmul.mubr.bf16.gmra.mxu0 %v485
  %v709 = vpop.f32.mrf.mxu0
  %v710 = vadd.f32 0.0, %v709
  %v711 = vpop.f32.mrf.mxu0
  %v712 = vpop.f32.mrf.mxu0
  %v713 = vadd.f32 0.0, %v712
  %v714 = vpop.f32.mrf.mxu0
  %715 = vmatprep.mubr.bf16.mxu0 0
  %716 = vmatmul.mubr.bf16.gmra.mxu0 %v486
  %v717 = vpop.f32.mrf.mxu0
  %v718 = vadd.f32 0.0, %v717
  %v719 = vpop.f32.mrf.mxu0
  %v720 = vpop.f32.mrf.mxu0
  %v721 = vadd.f32 0.0, %v720
  %v722 = vpop.f32.mrf.mxu0
  %723 = vmatprep.mubr.bf16.mxu0 0
  %724 = vmatmul.mubr.bf16.gmra.mxu0 %v487
  %v725 = vpop.f32.mrf.mxu0
  %v726 = vadd.f32 0.0, %v725
  %v727 = vpop.f32.mrf.mxu0
  %v728 = vpop.f32.mrf.mxu0
  %v729 = vadd.f32 0.0, %v728
  %v730 = vpop.f32.mrf.mxu0
  %731 = vmatprep.mubr.bf16.mxu0 0
  %732 = vmatmul.mubr.bf16.gmra.mxu0 %v488
  %v733 = vpop.f32.mrf.mxu0
  %v734 = vadd.f32 0.0, %v733
  %v735 = vpop.f32.mrf.mxu0
  %v736 = vpop.f32.mrf.mxu0
  %v737 = vadd.f32 0.0, %v736
  %v738 = vpop.f32.mrf.mxu0
  %739 = vmatprep.mubr.bf16.mxu0 0
  %740 = vmatmul.mubr.bf16.gmra.mxu0 %v489
  %v741 = vpop.f32.mrf.mxu0
  %v742 = vadd.f32 0.0, %v741
  %v743 = vpop.f32.mrf.mxu0
  %v744 = vpop.f32.mrf.mxu0
  %v745 = vadd.f32 0.0, %v744
  %v746 = vpop.f32.mrf.mxu0
  %747 = vmatprep.mubr.bf16.mxu0 0
  %748 = vmatmul.mubr.bf16.gmra.mxu0 %v490
  %v749 = vpop.f32.mrf.mxu0
  %v750 = vadd.f32 0.0, %v749
  %v751 = vpop.f32.mrf.mxu0
  %v752 = vpop.f32.mrf.mxu0
  %v753 = vadd.f32 0.0, %v752
  %v754 = vpop.f32.mrf.mxu0
  %755 = vmatprep.mubr.bf16.mxu0 0
  %756 = vmatmul.mubr.bf16.gmra.mxu0 %v491
  %v757 = vpop.f32.mrf.mxu0
  %v758 = vadd.f32 0.0, %v757
  %v759 = vpop.f32.mrf.mxu0
  %v760 = vpop.f32.mrf.mxu0
  %v761 = vadd.f32 0.0, %v760
  %v762 = vpop.f32.mrf.mxu0
  %763 = vmatprep.mubr.bf16.mxu0 0
  %764 = vmatmul.mubr.bf16.gmra.mxu0 %v492
  %v765 = vpop.f32.mrf.mxu0
  %v766 = vadd.f32 0.0, %v765
  %v767 = vpop.f32.mrf.mxu0
  %v768 = vpop.f32.mrf.mxu0
  %v769 = vadd.f32 0.0, %v768
  %v770 = vpop.f32.mrf.mxu0
  %771 = vmatprep.mubr.bf16.mxu0 0
  %772 = vmatmul.mubr.bf16.gmra.mxu0 %v493
  %v773 = vpop.f32.mrf.mxu0
  %v774 = vadd.f32 0.0, %v773
  %v775 = vpop.f32.mrf.mxu0
  %v776 = vpop.f32.mrf.mxu0
  %v777 = vadd.f32 0.0, %v776
  %v778 = vpop.f32.mrf.mxu0
  %779 = vmatprep.mubr.bf16.mxu0 0
  %780 = vmatmul.mubr.bf16.gmra.mxu0 %v494
  %v781 = vpop.f32.mrf.mxu0
  %v782 = vadd.f32 0.0, %v781
  %v783 = vpop.f32.mrf.mxu0
  %v784 = vpop.f32.mrf.mxu0
  %v785 = vadd.f32 0.0, %v784
  %v786 = vpop.f32.mrf.mxu0
  %787 = vmatprep.mubr.bf16.mxu0 0
  %788 = vmatmul.mubr.bf16.gmra.mxu0 %v495
  %v789 = vpop.f32.mrf.mxu0
  %v790 = vadd.f32 0.0, %v789
  %v791 = vpop.f32.mrf.mxu0
  %v792 = vpop.f32.mrf.mxu0
  %v793 = vadd.f32 0.0, %v792
  %v794 = vpop.f32.mrf.mxu0
  %795 = vmatprep.mubr.bf16.mxu0 0
  %796 = vmatmul.mubr.bf16.gmra.mxu0 %v496
  %v797 = vpop.f32.mrf.mxu0
  %v798 = vadd.f32 0.0, %v797
  %v799 = vpop.f32.mrf.mxu0
  %v800 = vpop.f32.mrf.mxu0
  %v801 = vadd.f32 0.0, %v800
  %v802 = vpop.f32.mrf.mxu0
  %803 = vmatprep.mubr.bf16.mxu0 0
  %804 = vmatmul.mubr.bf16.gmra.mxu0 %v497
  %v805 = vpop.f32.mrf.mxu0
  %v806 = vadd.f32 0.0, %v805
  %v807 = vpop.f32.mrf.mxu0
  %v808 = vpop.f32.mrf.mxu0
  %v809 = vadd.f32 0.0, %v808
  %v810 = vpop.f32.mrf.mxu0
  %811 = vmatprep.mubr.bf16.mxu0 0
  %812 = vmatmul.mubr.bf16.gmra.mxu0 %v498
  %v813 = vpop.f32.mrf.mxu0
  %v814 = vadd.f32 0.0, %v813
  %v815 = vpop.f32.mrf.mxu0
  %v816 = vpop.f32.mrf.mxu0
  %v817 = vadd.f32 0.0, %v816
  %v818 = vpop.f32.mrf.mxu0
  %819 = vdwg.mxu0
  %vm820 = vcmask 261120
  %821 = vst.msk [vmem:[#allocation2] sm:$0xff] %vm820, %v566
  %822 = vst.msk [vmem:[#allocation2 + $0x20] sm:$0xff] %vm820, %v569
  %823 = vst.msk [vmem:[#allocation2 + $0x40] sm:$0xff] %vm820, %v574
  %824 = vst.msk [vmem:[#allocation2 + $0x60] sm:$0xff] %vm820, %v577
  %829 = vrot.lane.b32.xlu0 %v582, 32
  %v830 = vpop.permute.xlu0 %829
  %831 = vrot.lane.b32.xlu0 %v585, 32
  %v832 = vpop.permute.xlu0 %831
  %833 = vrot.lane.b32.xlu0 %v590, 32
  %v834 = vpop.permute.xlu0 %833
  %835 = vrot.lane.b32.xlu0 %v593, 32
  %v836 = vpop.permute.xlu0 %835
  %vm841 = vcmask 523520
  %842 = vst.msk [vmem:[#allocation2] sm:$0xff] %vm841, %v830
  %843 = vst.msk [vmem:[#allocation2 + $0x20] sm:$0xff] %vm841, %v832
  %844 = vst.msk [vmem:[#allocation2 + $0x40] sm:$0xff] %vm841, %v834
  %845 = vst.msk [vmem:[#allocation2 + $0x60] sm:$0xff] %vm841, %v836
  %850 = vrot.lane.b32.xlu0 %v598, 64
  %v851 = vpop.permute.xlu0 %850
  %852 = vrot.lane.b32.xlu0 %v601, 64
  %v853 = vpop.permute.xlu0 %852
  %854 = vrot.lane.b32.xlu0 %v606, 64
  %v855 = vpop.permute.xlu0 %854
  %856 = vrot.lane.b32.xlu0 %v609, 64
  %v857 = vpop.permute.xlu0 %856
  %vm862 = vcmask 785920
  %863 = vst.msk [vmem:[#allocation2] sm:$0xff] %vm862, %v851
  %864 = vst.msk [vmem:[#allocation2 + $0x20] sm:$0xff] %vm862, %v853
  %865 = vst.msk [vmem:[#allocation2 + $0x40] sm:$0xff] %vm862, %v855
  %866 = vst.msk [vmem:[#allocation2 + $0x60] sm:$0xff] %vm862, %v857
  %871 = vrot.lane.b32.xlu0 %v614, 96
  %v872 = vpop.permute.xlu0 %871
  %873 = vrot.lane.b32.xlu0 %v617, 96
  %v874 = vpop.permute.xlu0 %873
  %875 = vrot.lane.b32.xlu0 %v622, 96
  %v876 = vpop.permute.xlu0 %875
  %877 = vrot.lane.b32.xlu0 %v625, 96
  %v878 = vpop.permute.xlu0 %877
  %vm883 = vcmask 1048320
  %884 = vst.msk [vmem:[#allocation2] sm:$0xff] %vm883, %v872
  %885 = vst.msk [vmem:[#allocation2 + $0x20] sm:$0xff] %vm883, %v874
  %886 = vst.msk [vmem:[#allocation2 + $0x40] sm:$0xff] %vm883, %v876
  %887 = vst.msk [vmem:[#allocation2 + $0x60] sm:$0xff] %vm883, %v878
  %888 = vst.msk [vmem:[#allocation2 + $0x8] sm:$0xff] %vm820, %v630
  %889 = vst.msk [vmem:[#allocation2 + $0x28] sm:$0xff] %vm820, %v633
  %890 = vst.msk [vmem:[#allocation2 + $0x48] sm:$0xff] %vm820, %v638
  %891 = vst.msk [vmem:[#allocation2 + $0x68] sm:$0xff] %vm820, %v641
  %896 = vrot.lane.b32.xlu0 %v646, 32
  %v897 = vpop.permute.xlu0 %896
  %898 = vrot.lane.b32.xlu0 %v649, 32
  %v899 = vpop.permute.xlu0 %898
  %900 = vrot.lane.b32.xlu0 %v654, 32
  %v901 = vpop.permute.xlu0 %900
  %902 = vrot.lane.b32.xlu0 %v657, 32
  %v903 = vpop.permute.xlu0 %902
  %908 = vst.msk [vmem:[#allocation2 + $0x8] sm:$0xff] %vm841, %v897
  %909 = vst.msk [vmem:[#allocation2 + $0x28] sm:$0xff] %vm841, %v899
  %910 = vst.msk [vmem:[#allocation2 + $0x48] sm:$0xff] %vm841, %v901
  %911 = vst.msk [vmem:[#allocation2 + $0x68] sm:$0xff] %vm841, %v903
  %916 = vrot.lane.b32.xlu0 %v662, 64
  %v917 = vpop.permute.xlu0 %916
  %918 = vrot.lane.b32.xlu0 %v665, 64
  %v919 = vpop.permute.xlu0 %918
  %920 = vrot.lane.b32.xlu0 %v670, 64
  %v921 = vpop.permute.xlu0 %920
  %922 = vrot.lane.b32.xlu0 %v673, 64
  %v923 = vpop.permute.xlu0 %922
  %928 = vst.msk [vmem:[#allocation2 + $0x8] sm:$0xff] %vm862, %v917
  %929 = vst.msk [vmem:[#allocation2 + $0x28] sm:$0xff] %vm862, %v919
  %930 = vst.msk [vmem:[#allocation2 + $0x48] sm:$0xff] %vm862, %v921
  %931 = vst.msk [vmem:[#allocation2 + $0x68] sm:$0xff] %vm862, %v923
  %936 = vrot.lane.b32.xlu0 %v678, 96
  %v937 = vpop.permute.xlu0 %936
  %938 = vrot.lane.b32.xlu0 %v681, 96
  %v939 = vpop.permute.xlu0 %938
  %940 = vrot.lane.b32.xlu0 %v686, 96
  %v941 = vpop.permute.xlu0 %940
  %942 = vrot.lane.b32.xlu0 %v689, 96
  %v943 = vpop.permute.xlu0 %942
  %948 = vst.msk [vmem:[#allocation2 + $0x8] sm:$0xff] %vm883, %v937
  %949 = vst.msk [vmem:[#allocation2 + $0x28] sm:$0xff] %vm883, %v939
  %950 = vst.msk [vmem:[#allocation2 + $0x48] sm:$0xff] %vm883, %v941
  %951 = vst.msk [vmem:[#allocation2 + $0x68] sm:$0xff] %vm883, %v943
  %952 = vst.msk [vmem:[#allocation2 + $0x10] sm:$0xff] %vm820, %v694
  %953 = vst.msk [vmem:[#allocation2 + $0x30] sm:$0xff] %vm820, %v697
  %954 = vst.msk [vmem:[#allocation2 + $0x50] sm:$0xff] %vm820, %v702
  %955 = vst.msk [vmem:[#allocation2 + $0x70] sm:$0xff] %vm820, %v705
  %960 = vrot.lane.b32.xlu0 %v710, 32
  %v961 = vpop.permute.xlu0 %960
  %962 = vrot.lane.b32.xlu0 %v713, 32
  %v963 = vpop.permute.xlu0 %962
  %964 = vrot.lane.b32.xlu0 %v718, 32
  %v965 = vpop.permute.xlu0 %964
  %966 = vrot.lane.b32.xlu0 %v721, 32
  %v967 = vpop.permute.xlu0 %966
  %972 = vst.msk [vmem:[#allocation2 + $0x10] sm:$0xff] %vm841, %v961
  %973 = vst.msk [vmem:[#allocation2 + $0x30] sm:$0xff] %vm841, %v963
  %974 = vst.msk [vmem:[#allocation2 + $0x50] sm:$0xff] %vm841, %v965
  %975 = vst.msk [vmem:[#allocation2 + $0x70] sm:$0xff] %vm841, %v967
  %980 = vrot.lane.b32.xlu0 %v726, 64
  %v981 = vpop.permute.xlu0 %980
  %982 = vrot.lane.b32.xlu0 %v729, 64
  %v983 = vpop.permute.xlu0 %982
  %984 = vrot.lane.b32.xlu0 %v734, 64
  %v985 = vpop.permute.xlu0 %984
  %986 = vrot.lane.b32.xlu0 %v737, 64
  %v987 = vpop.permute.xlu0 %986
  %992 = vst.msk [vmem:[#allocation2 + $0x10] sm:$0xff] %vm862, %v981
  %993 = vst.msk [vmem:[#allocation2 + $0x30] sm:$0xff] %vm862, %v983
  %994 = vst.msk [vmem:[#allocation2 + $0x50] sm:$0xff] %vm862, %v985
  %995 = vst.msk [vmem:[#allocation2 + $0x70] sm:$0xff] %vm862, %v987
  %1000 = vrot.lane.b32.xlu0 %v742, 96
  %v1001 = vpop.permute.xlu0 %1000
  %1002 = vrot.lane.b32.xlu0 %v745, 96
  %v1003 = vpop.permute.xlu0 %1002
  %1004 = vrot.lane.b32.xlu0 %v750, 96
  %v1005 = vpop.permute.xlu0 %1004
  %1006 = vrot.lane.b32.xlu0 %v753, 96
  %v1007 = vpop.permute.xlu0 %1006
  %1012 = vst.msk [vmem:[#allocation2 + $0x10] sm:$0xff] %vm883, %v1001
  %1013 = vst.msk [vmem:[#allocation2 + $0x30] sm:$0xff] %vm883, %v1003
  %1014 = vst.msk [vmem:[#allocation2 + $0x50] sm:$0xff] %vm883, %v1005
  %1015 = vst.msk [vmem:[#allocation2 + $0x70] sm:$0xff] %vm883, %v1007
  %1016 = vst.msk [vmem:[#allocation2 + $0x18] sm:$0xff] %vm820, %v758
  %1017 = vst.msk [vmem:[#allocation2 + $0x38] sm:$0xff] %vm820, %v761
  %1018 = vst.msk [vmem:[#allocation2 + $0x58] sm:$0xff] %vm820, %v766
  %1019 = vst.msk [vmem:[#allocation2 + $0x78] sm:$0xff] %vm820, %v769
  %1024 = vrot.lane.b32.xlu0 %v774, 32
  %v1025 = vpop.permute.xlu0 %1024
  %1026 = vrot.lane.b32.xlu0 %v777, 32
  %v1027 = vpop.permute.xlu0 %1026
  %1028 = vrot.lane.b32.xlu0 %v782, 32
  %v1029 = vpop.permute.xlu0 %1028
  %1030 = vrot.lane.b32.xlu0 %v785, 32
  %v1031 = vpop.permute.xlu0 %1030
  %1036 = vst.msk [vmem:[#allocation2 + $0x18] sm:$0xff] %vm841, %v1025
  %1037 = vst.msk [vmem:[#allocation2 + $0x38] sm:$0xff] %vm841, %v1027
  %1038 = vst.msk [vmem:[#allocation2 + $0x58] sm:$0xff] %vm841, %v1029
  %1039 = vst.msk [vmem:[#allocation2 + $0x78] sm:$0xff] %vm841, %v1031
  %1044 = vrot.lane.b32.xlu0 %v790, 64
  %v1045 = vpop.permute.xlu0 %1044
  %1046 = vrot.lane.b32.xlu0 %v793, 64
  %v1047 = vpop.permute.xlu0 %1046
  %1048 = vrot.lane.b32.xlu0 %v798, 64
  %v1049 = vpop.permute.xlu0 %1048
  %1050 = vrot.lane.b32.xlu0 %v801, 64
  %v1051 = vpop.permute.xlu0 %1050
  %1056 = vst.msk [vmem:[#allocation2 + $0x18] sm:$0xff] %vm862, %v1045
  %1057 = vst.msk [vmem:[#allocation2 + $0x38] sm:$0xff] %vm862, %v1047
  %1058 = vst.msk [vmem:[#allocation2 + $0x58] sm:$0xff] %vm862, %v1049
  %1059 = vst.msk [vmem:[#allocation2 + $0x78] sm:$0xff] %vm862, %v1051
  %1064 = vrot.lane.b32.xlu0 %v806, 96
  %v1065 = vpop.permute.xlu0 %1064
  %1066 = vrot.lane.b32.xlu0 %v809, 96
  %v1067 = vpop.permute.xlu0 %1066
  %1068 = vrot.lane.b32.xlu0 %v814, 96
  %v1069 = vpop.permute.xlu0 %1068
  %1070 = vrot.lane.b32.xlu0 %v817, 96
  %v1071 = vpop.permute.xlu0 %1070
  %1076 = vst.msk [vmem:[#allocation2 + $0x18] sm:$0xff] %vm883, %v1065
  %1077 = vst.msk [vmem:[#allocation2 + $0x38] sm:$0xff] %vm883, %v1067
  %1078 = vst.msk [vmem:[#allocation2 + $0x58] sm:$0xff] %vm883, %v1069
  %1079 = vst.msk [vmem:[#allocation2 + $0x78] sm:$0xff] %vm883, %v1071
  %v1080 = vld [vmem:[#allocation2] sm:$0xff]
  %v1081 = vld [vmem:[#allocation2 + $0x8] sm:$0xff]
  %v1082 = vld [vmem:[#allocation2 + $0x10] sm:$0xff]
  %v1083 = vld [vmem:[#allocation2 + $0x18] sm:$0xff]
  %v1084 = vld [vmem:[#allocation2 + $0x20] sm:$0xff]
  %v1085 = vld [vmem:[#allocation2 + $0x28] sm:$0xff]
  %v1086 = vld [vmem:[#allocation2 + $0x30] sm:$0xff]
  %v1087 = vld [vmem:[#allocation2 + $0x38] sm:$0xff]
  %v1088 = vld [vmem:[#allocation2 + $0x40] sm:$0xff]
  %v1089 = vld [vmem:[#allocation2 + $0x48] sm:$0xff]
  %v1090 = vld [vmem:[#allocation2 + $0x50] sm:$0xff]
  %v1091 = vld [vmem:[#allocation2 + $0x58] sm:$0xff]
  %v1092 = vld [vmem:[#allocation2 + $0x60] sm:$0xff]
  %v1093 = vld [vmem:[#allocation2 + $0x68] sm:$0xff]
  %v1094 = vld [vmem:[#allocation2 + $0x70] sm:$0xff]
  %v1095 = vld [vmem:[#allocation2 + $0x78] sm:$0xff]
  %v1096 = vpack.c.bf16 %v1084, %v1080
  %v1097 = vpack.c.bf16 %v1085, %v1081
  %v1098 = vpack.c.bf16 %v1086, %v1082
  %v1099 = vpack.c.bf16 %v1087, %v1083
  %v1100 = vpack.c.bf16 %v1092, %v1088
  %v1101 = vpack.c.bf16 %v1093, %v1089
  %v1102 = vpack.c.bf16 %v1094, %v1090
  %v1103 = vpack.c.bf16 %v1095, %v1091
  %v1104 = vld [vmem:[%s4] sm:$0xf]
  %v1105 = vld [vmem:[%s4 + $0x4] sm:$0xf]
  %v1106 = vld [vmem:[%s4 + $0x8] sm:$0xf]
  %v1107 = vld [vmem:[%s4 + $0xc] sm:$0xf]
  %v1108 = vld [vmem:[%s4 + $0x10] sm:$0xf]
  %v1109 = vld [vmem:[%s4 + $0x14] sm:$0xf]
  %v1110 = vld [vmem:[%s4 + $0x18] sm:$0xf]
  %v1111 = vld [vmem:[%s4 + $0x1c] sm:$0xf]
  %v1112 = vld [vmem:[%s4 + $0x20] sm:$0xf]
  %v1113 = vld [vmem:[%s4 + $0x24] sm:$0xf]
  %v1114 = vld [vmem:[%s4 + $0x28] sm:$0xf]
  %v1115 = vld [vmem:[%s4 + $0x2c] sm:$0xf]
  %v1116 = vld [vmem:[%s4 + $0x30] sm:$0xf]
  %v1117 = vld [vmem:[%s4 + $0x34] sm:$0xf]
  %v1118 = vld [vmem:[%s4 + $0x38] sm:$0xf]
  %v1119 = vld [vmem:[%s4 + $0x3c] sm:$0xf]
  %v1120 = vld [vmem:[%s4 + $0x40] sm:$0xf]
  %v1121 = vld [vmem:[%s4 + $0x44] sm:$0xf]
  %v1122 = vld [vmem:[%s4 + $0x48] sm:$0xf]
  %v1123 = vld [vmem:[%s4 + $0x4c] sm:$0xf]
  %v1124 = vld [vmem:[%s4 + $0x50] sm:$0xf]
  %v1125 = vld [vmem:[%s4 + $0x54] sm:$0xf]
  %v1126 = vld [vmem:[%s4 + $0x58] sm:$0xf]
  %v1127 = vld [vmem:[%s4 + $0x5c] sm:$0xf]
  %v1128 = vld [vmem:[%s4 + $0x60] sm:$0xf]
  %v1129 = vld [vmem:[%s4 + $0x64] sm:$0xf]
  %v1130 = vld [vmem:[%s4 + $0x68] sm:$0xf]
  %v1131 = vld [vmem:[%s4 + $0x6c] sm:$0xf]
  %v1132 = vld [vmem:[%s4 + $0x70] sm:$0xf]
  %v1133 = vld [vmem:[%s4 + $0x74] sm:$0xf]
  %v1134 = vld [vmem:[%s4 + $0x78] sm:$0xf]
  %v1135 = vld [vmem:[%s4 + $0x7c] sm:$0xf]
  %v1136 = vld [vmem:[%s4 + $0x80] sm:$0xf]
  %v1137 = vld [vmem:[%s4 + $0x84] sm:$0xf]
  %v1138 = vld [vmem:[%s4 + $0x88] sm:$0xf]
  %v1139 = vld [vmem:[%s4 + $0x8c] sm:$0xf]
  %v1140 = vld [vmem:[%s4 + $0x90] sm:$0xf]
  %v1141 = vld [vmem:[%s4 + $0x94] sm:$0xf]
  %v1142 = vld [vmem:[%s4 + $0x98] sm:$0xf]
  %v1143 = vld [vmem:[%s4 + $0x9c] sm:$0xf]
  %v1144 = vld [vmem:[%s4 + $0xa0] sm:$0xf]
  %v1145 = vld [vmem:[%s4 + $0xa4] sm:$0xf]
  %v1146 = vld [vmem:[%s4 + $0xa8] sm:$0xf]
  %v1147 = vld [vmem:[%s4 + $0xac] sm:$0xf]
  %v1148 = vld [vmem:[%s4 + $0xb0] sm:$0xf]
  %v1149 = vld [vmem:[%s4 + $0xb4] sm:$0xf]
  %v1150 = vld [vmem:[%s4 + $0xb8] sm:$0xf]
  %v1151 = vld [vmem:[%s4 + $0xbc] sm:$0xf]
  %v1152 = vld [vmem:[%s4 + $0xc0] sm:$0xf]
  %v1153 = vld [vmem:[%s4 + $0xc4] sm:$0xf]
  %v1154 = vld [vmem:[%s4 + $0xc8] sm:$0xf]
  %v1155 = vld [vmem:[%s4 + $0xcc] sm:$0xf]
  %v1156 = vld [vmem:[%s4 + $0xd0] sm:$0xf]
  %v1157 = vld [vmem:[%s4 + $0xd4] sm:$0xf]
  %v1158 = vld [vmem:[%s4 + $0xd8] sm:$0xf]
  %v1159 = vld [vmem:[%s4 + $0xdc] sm:$0xf]
  %v1160 = vld [vmem:[%s4 + $0xe0] sm:$0xf]
  %v1161 = vld [vmem:[%s4 + $0xe4] sm:$0xf]
  %v1162 = vld [vmem:[%s4 + $0xe8] sm:$0xf]
  %v1163 = vld [vmem:[%s4 + $0xec] sm:$0xf]
  %v1164 = vld [vmem:[%s4 + $0xf0] sm:$0xf]
  %v1165 = vld [vmem:[%s4 + $0xf4] sm:$0xf]
  %v1166 = vld [vmem:[%s4 + $0xf8] sm:$0xf]
  %v1167 = vld [vmem:[%s4 + $0xfc] sm:$0xf]
  %v1168 = vld [vmem:[%s5] sm:$0x1]
  %v1170 = vlaneseq
  %v1171 = vshrl.u32 %v1170, 7
  %v1172 = vsub.s32 0, %v1171
  %v1173 = vrot.slane %v1168, %v1172
  %v1239 = vunpack.c.l.b16 %v1104
  %v1240 = vunpack.c.l.b16 %v1105
  %v1241 = vunpack.c.l.b16 %v1106
  %v1242 = vunpack.c.l.b16 %v1107
  %v1243 = vunpack.c.l.b16 %v1108
  %v1244 = vunpack.c.l.b16 %v1109
  %v1245 = vunpack.c.l.b16 %v1110
  %v1246 = vunpack.c.l.b16 %v1111
  %v1247 = vunpack.c.l.b16 %v1112
  %v1248 = vunpack.c.l.b16 %v1113
  %v1249 = vunpack.c.l.b16 %v1114
  %v1250 = vunpack.c.l.b16 %v1115
  %v1251 = vunpack.c.l.b16 %v1116
  %v1252 = vunpack.c.l.b16 %v1117
  %v1253 = vunpack.c.l.b16 %v1118
  %v1254 = vunpack.c.l.b16 %v1119
  %v1255 = vunpack.c.l.b16 %v1120
  %v1256 = vunpack.c.l.b16 %v1121
  %v1257 = vunpack.c.l.b16 %v1122
  %v1258 = vunpack.c.l.b16 %v1123
  %v1259 = vunpack.c.l.b16 %v1124
  %v1260 = vunpack.c.l.b16 %v1125
  %v1261 = vunpack.c.l.b16 %v1126
  %v1262 = vunpack.c.l.b16 %v1127
  %v1263 = vunpack.c.l.b16 %v1128
  %v1264 = vunpack.c.l.b16 %v1129
  %v1265 = vunpack.c.l.b16 %v1130
  %v1266 = vunpack.c.l.b16 %v1131
  %v1267 = vunpack.c.l.b16 %v1132
  %v1268 = vunpack.c.l.b16 %v1133
  %v1269 = vunpack.c.l.b16 %v1134
  %v1270 = vunpack.c.l.b16 %v1135
  %v1271 = vunpack.c.l.b16 %v1136
  %v1272 = vunpack.c.l.b16 %v1137
  %v1273 = vunpack.c.l.b16 %v1138
  %v1274 = vunpack.c.l.b16 %v1139
  %v1275 = vunpack.c.l.b16 %v1140
  %v1276 = vunpack.c.l.b16 %v1141
  %v1277 = vunpack.c.l.b16 %v1142
  %v1278 = vunpack.c.l.b16 %v1143
  %v1279 = vunpack.c.l.b16 %v1144
  %v1280 = vunpack.c.l.b16 %v1145
  %v1281 = vunpack.c.l.b16 %v1146
  %v1282 = vunpack.c.l.b16 %v1147
  %v1283 = vunpack.c.l.b16 %v1148
  %v1284 = vunpack.c.l.b16 %v1149
  %v1285 = vunpack.c.l.b16 %v1150
  %v1286 = vunpack.c.l.b16 %v1151
  %v1287 = vunpack.c.l.b16 %v1152
  %v1288 = vunpack.c.l.b16 %v1153
  %v1289 = vunpack.c.l.b16 %v1154
  %v1290 = vunpack.c.l.b16 %v1155
  %v1291 = vunpack.c.l.b16 %v1156
  %v1292 = vunpack.c.l.b16 %v1157
  %v1293 = vunpack.c.l.b16 %v1158
  %v1294 = vunpack.c.l.b16 %v1159
  %v1295 = vunpack.c.l.b16 %v1160
  %v1296 = vunpack.c.l.b16 %v1161
  %v1297 = vunpack.c.l.b16 %v1162
  %v1298 = vunpack.c.l.b16 %v1163
  %v1299 = vunpack.c.l.b16 %v1164
  %v1300 = vunpack.c.l.b16 %v1165
  %v1301 = vunpack.c.l.b16 %v1166
  %v1302 = vunpack.c.l.b16 %v1167
  %v1303 = vpack.c.b16 %v1240, %v1239
  %v1304 = vpack.c.b16 %v1242, %v1241
  %v1305 = vpack.c.b16 %v1244, %v1243
  %v1306 = vpack.c.b16 %v1246, %v1245
  %v1307 = vpack.c.b16 %v1248, %v1247
  %v1308 = vpack.c.b16 %v1250, %v1249
  %v1309 = vpack.c.b16 %v1252, %v1251
  %v1310 = vpack.c.b16 %v1254, %v1253
  %v1311 = vpack.c.b16 %v1256, %v1255
  %v1312 = vpack.c.b16 %v1258, %v1257
  %v1313 = vpack.c.b16 %v1260, %v1259
  %v1314 = vpack.c.b16 %v1262, %v1261
  %v1315 = vpack.c.b16 %v1264, %v1263
  %v1316 = vpack.c.b16 %v1266, %v1265
  %v1317 = vpack.c.b16 %v1268, %v1267
  %v1318 = vpack.c.b16 %v1270, %v1269
  %v1319 = vpack.c.b16 %v1272, %v1271
  %v1320 = vpack.c.b16 %v1274, %v1273
  %v1321 = vpack.c.b16 %v1276, %v1275
  %v1322 = vpack.c.b16 %v1278, %v1277
  %v1323 = vpack.c.b16 %v1280, %v1279
  %v1324 = vpack.c.b16 %v1282, %v1281
  %v1325 = vpack.c.b16 %v1284, %v1283
  %v1326 = vpack.c.b16 %v1286, %v1285
  %v1327 = vpack.c.b16 %v1288, %v1287
  %v1328 = vpack.c.b16 %v1290, %v1289
  %v1329 = vpack.c.b16 %v1292, %v1291
  %v1330 = vpack.c.b16 %v1294, %v1293
  %v1331 = vpack.c.b16 %v1296, %v1295
  %v1332 = vpack.c.b16 %v1298, %v1297
  %v1333 = vpack.c.b16 %v1300, %v1299
  %v1334 = vpack.c.b16 %v1302, %v1301
  %1367 = vmatprep.subr.bf16.mxu0 0
  %1368 = vmatpush1.bf16.msra.mxu0 %v1310
  %1369 = vmatprep.subr.bf16.mxu0 0
  %1370 = vmatpush1.bf16.msra.mxu0 %v1309
  %1371 = vmatprep.subr.bf16.mxu0 0
  %1372 = vmatpush1.bf16.msra.mxu0 %v1308
  %1373 = vmatprep.subr.bf16.mxu0 0
  %1374 = vmatpush1.bf16.msra.mxu0 %v1307
  %1375 = vmatprep.subr.bf16.mxu0 0
  %1376 = vmatpush1.bf16.msra.mxu0 %v1306
  %1377 = vmatprep.subr.bf16.mxu0 0
  %1378 = vmatpush1.bf16.msra.mxu0 %v1305
  %1379 = vmatprep.subr.bf16.mxu0 0
  %1380 = vmatpush1.bf16.msra.mxu0 %v1304
  %1381 = vmatprep.subr.bf16.mxu0 0
  %1382 = vmatpush1.bf16.msra.mxu0 %v1303
  %1383 = vmatprep.subr.bf16.mxu0 0
  %1384 = vmatpush2.bf16.msra.mxu0 %v1318
  %1385 = vmatprep.subr.bf16.mxu0 0
  %1386 = vmatpush2.bf16.msra.mxu0 %v1317
  %1387 = vmatprep.subr.bf16.mxu0 0
  %1388 = vmatpush2.bf16.msra.mxu0 %v1316
  %1389 = vmatprep.subr.bf16.mxu0 0
  %1390 = vmatpush2.bf16.msra.mxu0 %v1315
  %1391 = vmatprep.subr.bf16.mxu0 0
  %1392 = vmatpush2.bf16.msra.mxu0 %v1314
  %1393 = vmatprep.subr.bf16.mxu0 0
  %1394 = vmatpush2.bf16.msra.mxu0 %v1313
  %1395 = vmatprep.subr.bf16.mxu0 0
  %1396 = vmatpush2.bf16.msra.mxu0 %v1312
  %1397 = vmatprep.subr.bf16.mxu0 0
  %1398 = vmatpush2.bf16.msra.mxu0 %v1311
  %1399 = vmatprep.mubr.bf16.mxu0 %v1097
  %1400 = vmatmul.mubr.bf16.gmra.mxu0 %v1096
  %v1401 = vpop.f32.mrf.mxu0
  %v1402 = vadd.f32 %v1173, %v1401
  %v1403 = vpop.f32.mrf.mxu0
  %v1404 = vpop.f32.mrf.mxu0
  %v1405 = vadd.f32 %v1173, %v1404
  %v1406 = vpop.f32.mrf.mxu0
  %1407 = vmatprep.mubr.bf16.mxu0 %v1101
  %1408 = vmatmul.mubr.bf16.gmra.mxu0 %v1100
  %v1409 = vpop.f32.mrf.mxu0
  %v1410 = vadd.f32 %v1173, %v1409
  %v1411 = vpop.f32.mrf.mxu0
  %v1412 = vpop.f32.mrf.mxu0
  %v1413 = vadd.f32 %v1173, %v1412
  %v1414 = vpop.f32.mrf.mxu0
  %1415 = vdwg.mxu0
  %1416 = vmatprep.subr.bf16.mxu0 0
  %1417 = vmatpush1.bf16.msra.mxu0 %v1326
  %1418 = vmatprep.subr.bf16.mxu0 0
  %1419 = vmatpush1.bf16.msra.mxu0 %v1325
  %1420 = vmatprep.subr.bf16.mxu0 0
  %1421 = vmatpush1.bf16.msra.mxu0 %v1324
  %1422 = vmatprep.subr.bf16.mxu0 0
  %1423 = vmatpush1.bf16.msra.mxu0 %v1323
  %1424 = vmatprep.subr.bf16.mxu0 0
  %1425 = vmatpush1.bf16.msra.mxu0 %v1322
  %1426 = vmatprep.subr.bf16.mxu0 0
  %1427 = vmatpush1.bf16.msra.mxu0 %v1321
  %1428 = vmatprep.subr.bf16.mxu0 0
  %1429 = vmatpush1.bf16.msra.mxu0 %v1320
  %1430 = vmatprep.subr.bf16.mxu0 0
  %1431 = vmatpush1.bf16.msra.mxu0 %v1319
  %1432 = vmatprep.subr.bf16.mxu0 0
  %1433 = vmatpush2.bf16.msra.mxu0 %v1334
  %1434 = vmatprep.subr.bf16.mxu0 0
  %1435 = vmatpush2.bf16.msra.mxu0 %v1333
  %1436 = vmatprep.subr.bf16.mxu0 0
  %1437 = vmatpush2.bf16.msra.mxu0 %v1332
  %1438 = vmatprep.subr.bf16.mxu0 0
  %1439 = vmatpush2.bf16.msra.mxu0 %v1331
  %1440 = vmatprep.subr.bf16.mxu0 0
  %1441 = vmatpush2.bf16.msra.mxu0 %v1330
  %1442 = vmatprep.subr.bf16.mxu0 0
  %1443 = vmatpush2.bf16.msra.mxu0 %v1329
  %1444 = vmatprep.subr.bf16.mxu0 0
  %1445 = vmatpush2.bf16.msra.mxu0 %v1328
  %1446 = vmatprep.subr.bf16.mxu0 0
  %1447 = vmatpush2.bf16.msra.mxu0 %v1327
  %1448 = vmatprep.mubr.bf16.mxu0 %v1099
  %1449 = vmatmul.mubr.bf16.gmra.mxu0 %v1098
  %v1450 = vpop.f32.mrf.mxu0
  %v1451 = vadd.f32 %v1402, %v1450
  %v1452 = vpop.f32.mrf.mxu0
  %v1453 = vpop.f32.mrf.mxu0
  %v1454 = vadd.f32 %v1405, %v1453
  %v1455 = vpop.f32.mrf.mxu0
  %1456 = vmatprep.mubr.bf16.mxu0 %v1103
  %1457 = vmatmul.mubr.bf16.gmra.mxu0 %v1102
  %v1458 = vpop.f32.mrf.mxu0
  %v1459 = vadd.f32 %v1410, %v1458
  %v1460 = vpop.f32.mrf.mxu0
  %v1461 = vpop.f32.mrf.mxu0
  %v1462 = vadd.f32 %v1413, %v1461
  %v1463 = vpop.f32.mrf.mxu0
  %1464 = vdwg.mxu0
  %v1465 = vmax.f32 %v1451, 0.0
  %v1466 = vmax.f32 %v1454, 0.0
  %v1467 = vmax.f32 %v1459, 0.0
  %v1468 = vmax.f32 %v1462, 0.0
  %v1469 = vld [vmem:[%s6] sm:$0x3]
  %v1471 = vsel %vm820, %v1469, 0
  %1473 = vmatprep.subr.mxu0 0.0
  %1474 = vmatpush1.msra.mxu0 0.0
  %1475 = vmatprep.subr.mxu0 0.0
  %1476 = vmatpush1.msra.mxu0 0.0
  %1477 = vmatprep.subr.mxu0 0.0
  %1478 = vmatpush1.msra.mxu0 0.0
  %1479 = vmatprep.subr.mxu0 0.0
  %1480 = vmatpush1.msra.mxu0 0.0
  %1481 = vmatprep.subr.mxu0 0.0
  %1482 = vmatpush1.msra.mxu0 0.0
  %1483 = vmatprep.subr.mxu0 0.0
  %1484 = vmatpush1.msra.mxu0 0.0
  %1485 = vmatprep.subr.mxu0 0.0
  %1486 = vmatpush1.msra.mxu0 0.0
  %1487 = vmatprep.subr.mxu0 0.0
  %1488 = vmatpush1.msra.mxu0 0.0
  %1489 = vmatprep.subr.mxu0 0.0
  %1490 = vmatpush1.msra.mxu0 0.0
  %1491 = vmatprep.subr.mxu0 0.0
  %1492 = vmatpush1.msra.mxu0 0.0
  %1493 = vmatprep.subr.mxu0 0.0
  %1494 = vmatpush1.msra.mxu0 0.0
  %1495 = vmatprep.subr.mxu0 0.0
  %1496 = vmatpush1.msra.mxu0 0.0
  %1497 = vmatprep.subr.mxu0 0.0
  %1498 = vmatpush1.msra.mxu0 %v1468
  %1499 = vmatprep.subr.mxu0 0.0
  %1500 = vmatpush1.msra.mxu0 %v1467
  %1501 = vmatprep.subr.mxu0 0.0
  %1502 = vmatpush1.msra.mxu0 %v1466
  %1503 = vmatprep.subr.mxu0 0.0
  %1504 = vmatpush1.msra.mxu0 %v1465
  %1505 = vmatprep.subr.mxu0 0.0
  %1506 = vmatpush2.msra.mxu0 0.0
  %1507 = vmatprep.subr.mxu0 0.0
  %1508 = vmatpush2.msra.mxu0 0.0
  %1509 = vmatprep.subr.mxu0 0.0
  %1510 = vmatpush2.msra.mxu0 0.0
  %1511 = vmatprep.subr.mxu0 0.0
  %1512 = vmatpush2.msra.mxu0 0.0
  %1513 = vmatprep.subr.mxu0 0.0
  %1514 = vmatpush2.msra.mxu0 0.0
  %1515 = vmatprep.subr.mxu0 0.0
  %1516 = vmatpush2.msra.mxu0 0.0
  %1517 = vmatprep.subr.mxu0 0.0
  %1518 = vmatpush2.msra.mxu0 0.0
  %1519 = vmatprep.subr.mxu0 0.0
  %1520 = vmatpush2.msra.mxu0 0.0
  %1521 = vmatprep.subr.mxu0 0.0
  %1522 = vmatpush2.msra.mxu0 0.0
  %1523 = vmatprep.subr.mxu0 0.0
  %1524 = vmatpush2.msra.mxu0 0.0
  %1525 = vmatprep.subr.mxu0 0.0
  %1526 = vmatpush2.msra.mxu0 0.0
  %1527 = vmatprep.subr.mxu0 0.0
  %1528 = vmatpush2.msra.mxu0 0.0
  %1529 = vmatprep.subr.mxu0 0.0
  %1530 = vmatpush2.msra.mxu0 0.0
  %1531 = vmatprep.subr.mxu0 0.0
  %1532 = vmatpush2.msra.mxu0 0.0
  %1533 = vmatprep.subr.mxu0 0.0
  %1534 = vmatpush2.msra.mxu0 0.0
  %1535 = vmatprep.subr.mxu0 0.0
  %1536 = vmatpush2.msra.mxu0 0.0
  %1537 = vmatprep.mubr.f32.mxu0 0.0
  %1538 = vmatmul.mubr.f32.gmra.mxu0 %v1471
  %v1539 = vpop.f32.mrf.mxu0
  %v1540 = vadd.f32 0.0, %v1539
  %v1541 = vpop.f32.mrf.mxu0
  %1542 = vdwg.mxu0
  %v1543 = vpack.c.bf16 %v1540, %v1540
  %v1544 = vld [vmem:[%s7] sm:$0xff]
  %v1545 = vld [vmem:[%s7 + $0x8] sm:$0xff]
  %v1546 = vld [vmem:[%s7 + $0x10] sm:$0xff]
  %v1547 = vld [vmem:[%s7 + $0x18] sm:$0xff]
  %v1548 = vld [vmem:[%s7 + $0x20] sm:$0xff]
  %v1549 = vld [vmem:[%s7 + $0x28] sm:$0xff]
  %v1550 = vld [vmem:[%s7 + $0x30] sm:$0xff]
  %v1551 = vld [vmem:[%s7 + $0x38] sm:$0xff]
  %v1552 = vld [vmem:[%s7 + $0x40] sm:$0xff]
  %v1553 = vld [vmem:[%s7 + $0x48] sm:$0xff]
  %v1554 = vld [vmem:[%s7 + $0x50] sm:$0xff]
  %v1555 = vld [vmem:[%s7 + $0x58] sm:$0xff]
  %v1556 = vld [vmem:[%s7 + $0x60] sm:$0xff]
  %v1557 = vld [vmem:[%s7 + $0x68] sm:$0xff]
  %v1558 = vld [vmem:[%s7 + $0x70] sm:$0xff]
  %v1559 = vld [vmem:[%s7 + $0x78] sm:$0xff]
  %v1560 = vld [vmem:[%s7 + $0x80] sm:$0xff]
  %v1561 = vld [vmem:[%s7 + $0x88] sm:$0xff]
  %v1562 = vld [vmem:[%s7 + $0x90] sm:$0xff]
  %v1563 = vld [vmem:[%s7 + $0x98] sm:$0xff]
  %v1564 = vld [vmem:[%s7 + $0xa0] sm:$0xff]
  %v1565 = vld [vmem:[%s7 + $0xa8] sm:$0xff]
  %v1566 = vld [vmem:[%s7 + $0xb0] sm:$0xff]
  %v1567 = vld [vmem:[%s7 + $0xb8] sm:$0xff]
  %v1568 = vld [vmem:[%s7 + $0xc0] sm:$0xff]
  %v1569 = vld [vmem:[%s7 + $0xc8] sm:$0xff]
  %v1570 = vld [vmem:[%s7 + $0xd0] sm:$0xff]
  %v1571 = vld [vmem:[%s7 + $0xd8] sm:$0xff]
  %v1572 = vld [vmem:[%s7 + $0xe0] sm:$0xff]
  %v1573 = vld [vmem:[%s7 + $0xe8] sm:$0xff]
  %v1574 = vld [vmem:[%s7 + $0xf0] sm:$0xff]
  %v1575 = vld [vmem:[%s7 + $0xf8] sm:$0xff]
  %v1576 = vld [vmem:[%s8] sm:$0xff]
  %v1578 = vlaneseq
  %v1579 = vshrl.u32 %v1578, 7
  %v1580 = vsub.s32 0, %v1579
  %v1581 = vrot.slane %v1576, %v1580
  %v1582 = vlaneseq
  %v1583 = vshrl.u32 %v1582, 7
  %v1584 = vsub.s32 1, %v1583
  %v1585 = vrot.slane %v1576, %v1584
  %v1586 = vlaneseq
  %v1587 = vshrl.u32 %v1586, 7
  %v1588 = vsub.s32 2, %v1587
  %v1589 = vrot.slane %v1576, %v1588
  %v1590 = vlaneseq
  %v1591 = vshrl.u32 %v1590, 7
  %v1592 = vsub.s32 3, %v1591
  %v1593 = vrot.slane %v1576, %v1592
  %v1594 = vlaneseq
  %v1595 = vshrl.u32 %v1594, 7
  %v1596 = vsub.s32 4, %v1595
  %v1597 = vrot.slane %v1576, %v1596
  %v1598 = vlaneseq
  %v1599 = vshrl.u32 %v1598, 7
  %v1600 = vsub.s32 5, %v1599
  %v1601 = vrot.slane %v1576, %v1600
  %v1602 = vlaneseq
  %v1603 = vshrl.u32 %v1602, 7
  %v1604 = vsub.s32 6, %v1603
  %v1605 = vrot.slane %v1576, %v1604
  %v1606 = vlaneseq
  %v1607 = vshrl.u32 %v1606, 7
  %v1608 = vsub.s32 7, %v1607
  %v1609 = vrot.slane %v1576, %v1608
  %v1650 = vunpack.c.l.b16 %v1544
  %v1651 = vunpack.c.h.b16 %v1544
  %v1652 = vunpack.c.l.b16 %v1545
  %v1653 = vunpack.c.h.b16 %v1545
  %v1654 = vunpack.c.l.b16 %v1546
  %v1655 = vunpack.c.h.b16 %v1546
  %v1656 = vunpack.c.l.b16 %v1547
  %v1657 = vunpack.c.h.b16 %v1547
  %v1658 = vunpack.c.l.b16 %v1548
  %v1659 = vunpack.c.h.b16 %v1548
  %v1660 = vunpack.c.l.b16 %v1549
  %v1661 = vunpack.c.h.b16 %v1549
  %v1662 = vunpack.c.l.b16 %v1550
  %v1663 = vunpack.c.h.b16 %v1550
  %v1664 = vunpack.c.l.b16 %v1551
  %v1665 = vunpack.c.h.b16 %v1551
  %v1666 = vunpack.c.l.b16 %v1552
  %v1667 = vunpack.c.h.b16 %v1552
  %v1668 = vunpack.c.l.b16 %v1553
  %v1669 = vunpack.c.h.b16 %v1553
  %v1670 = vunpack.c.l.b16 %v1554
  %v1671 = vunpack.c.h.b16 %v1554
  %v1672 = vunpack.c.l.b16 %v1555
  %v1673 = vunpack.c.h.b16 %v1555
  %v1674 = vunpack.c.l.b16 %v1556
  %v1675 = vunpack.c.h.b16 %v1556
  %v1676 = vunpack.c.l.b16 %v1557
  %v1677 = vunpack.c.h.b16 %v1557
  %v1678 = vunpack.c.l.b16 %v1558
  %v1679 = vunpack.c.h.b16 %v1558
  %v1680 = vunpack.c.l.b16 %v1559
  %v1681 = vunpack.c.h.b16 %v1559
  %v1682 = vunpack.c.l.b16 %v1560
  %v1683 = vunpack.c.h.b16 %v1560
  %v1684 = vunpack.c.l.b16 %v1561
  %v1685 = vunpack.c.h.b16 %v1561
  %v1686 = vunpack.c.l.b16 %v1562
  %v1687 = vunpack.c.h.b16 %v1562
  %v1688 = vunpack.c.l.b16 %v1563
  %v1689 = vunpack.c.h.b16 %v1563
  %v1690 = vunpack.c.l.b16 %v1564
  %v1691 = vunpack.c.h.b16 %v1564
  %v1692 = vunpack.c.l.b16 %v1565
  %v1693 = vunpack.c.h.b16 %v1565
  %v1694 = vunpack.c.l.b16 %v1566
  %v1695 = vunpack.c.h.b16 %v1566
  %v1696 = vunpack.c.l.b16 %v1567
  %v1697 = vunpack.c.h.b16 %v1567
  %v1698 = vunpack.c.l.b16 %v1568
  %v1699 = vunpack.c.h.b16 %v1568
  %v1700 = vunpack.c.l.b16 %v1569
  %v1701 = vunpack.c.h.b16 %v1569
  %v1702 = vunpack.c.l.b16 %v1570
  %v1703 = vunpack.c.h.b16 %v1570
  %v1704 = vunpack.c.l.b16 %v1571
  %v1705 = vunpack.c.h.b16 %v1571
  %v1706 = vunpack.c.l.b16 %v1572
  %v1707 = vunpack.c.h.b16 %v1572
  %v1708 = vunpack.c.l.b16 %v1573
  %v1709 = vunpack.c.h.b16 %v1573
  %v1710 = vunpack.c.l.b16 %v1574
  %v1711 = vunpack.c.h.b16 %v1574
  %v1712 = vunpack.c.l.b16 %v1575
  %v1713 = vunpack.c.h.b16 %v1575
  %v1714 = vpack.c.b16 %v1658, %v1650
  %v1715 = vpack.c.b16 %v1659, %v1651
  %v1716 = vpack.c.b16 %v1660, %v1652
  %v1717 = vpack.c.b16 %v1661, %v1653
  %v1718 = vpack.c.b16 %v1662, %v1654
  %v1719 = vpack.c.b16 %v1663, %v1655
  %v1720 = vpack.c.b16 %v1664, %v1656
  %v1721 = vpack.c.b16 %v1665, %v1657
  %v1722 = vpack.c.b16 %v1674, %v1666
  %v1723 = vpack.c.b16 %v1675, %v1667
  %v1724 = vpack.c.b16 %v1676, %v1668
  %v1725 = vpack.c.b16 %v1677, %v1669
  %v1726 = vpack.c.b16 %v1678, %v1670
  %v1727 = vpack.c.b16 %v1679, %v1671
  %v1728 = vpack.c.b16 %v1680, %v1672
  %v1729 = vpack.c.b16 %v1681, %v1673
  %v1730 = vpack.c.b16 %v1690, %v1682
  %v1731 = vpack.c.b16 %v1691, %v1683
  %v1732 = vpack.c.b16 %v1692, %v1684
  %v1733 = vpack.c.b16 %v1693, %v1685
  %v1734 = vpack.c.b16 %v1694, %v1686
  %v1735 = vpack.c.b16 %v1695, %v1687
  %v1736 = vpack.c.b16 %v1696, %v1688
  %v1737 = vpack.c.b16 %v1697, %v1689
  %v1738 = vpack.c.b16 %v1706, %v1698
  %v1739 = vpack.c.b16 %v1707, %v1699
  %v1740 = vpack.c.b16 %v1708, %v1700
  %v1741 = vpack.c.b16 %v1709, %v1701
  %v1742 = vpack.c.b16 %v1710, %v1702
  %v1743 = vpack.c.b16 %v1711, %v1703
  %v1744 = vpack.c.b16 %v1712, %v1704
  %v1745 = vpack.c.b16 %v1713, %v1705
  %vm1778 = vcmask 523264
  %v1780 = vsel %vm1778, %v1543, 0
  %1782 = vmatprep.subr.bf16.mxu0 0
  %1783 = vmatpush1.bf16.msra.mxu0 0
  %1784 = vmatprep.subr.bf16.mxu0 0
  %1785 = vmatpush1.bf16.msra.mxu0 0
  %1786 = vmatprep.subr.bf16.mxu0 0
  %1787 = vmatpush1.bf16.msra.mxu0 0
  %1788 = vmatprep.subr.bf16.mxu0 0
  %1789 = vmatpush1.bf16.msra.mxu0 0
  %1790 = vmatprep.subr.bf16.mxu0 %v1739
  %1791 = vmatpush1.bf16.msra.mxu0 %v1738
  %1792 = vmatprep.subr.bf16.mxu0 %v1731
  %1793 = vmatpush1.bf16.msra.mxu0 %v1730
  %1794 = vmatprep.subr.bf16.mxu0 %v1723
  %1795 = vmatpush1.bf16.msra.mxu0 %v1722
  %1796 = vmatprep.subr.bf16.mxu0 %v1715
  %1797 = vmatpush1.bf16.msra.mxu0 %v1714
  %1798 = vmatprep.subr.bf16.mxu0 0
  %1799 = vmatpush2.bf16.msra.mxu0 0
  %1800 = vmatprep.subr.bf16.mxu0 0
  %1801 = vmatpush2.bf16.msra.mxu0 0
  %1802 = vmatprep.subr.bf16.mxu0 0
  %1803 = vmatpush2.bf16.msra.mxu0 0
  %1804 = vmatprep.subr.bf16.mxu0 0
  %1805 = vmatpush2.bf16.msra.mxu0 0
  %1806 = vmatprep.subr.bf16.mxu0 0
  %1807 = vmatpush2.bf16.msra.mxu0 0
  %1808 = vmatprep.subr.bf16.mxu0 0
  %1809 = vmatpush2.bf16.msra.mxu0 0
  %1810 = vmatprep.subr.bf16.mxu0 0
  %1811 = vmatpush2.bf16.msra.mxu0 0
  %1812 = vmatprep.subr.bf16.mxu0 0
  %1813 = vmatpush2.bf16.msra.mxu0 0
  %1814 = vmatprep.mubr.bf16.mxu0 0
  %1815 = vmatmul.mubr.bf16.gmra.mxu0 %v1780
  %v1816 = vpop.f32.mrf.mxu0
  %v1817 = vadd.f32 %v1581, %v1816
  %v1818 = vpop.f32.mrf.mxu0
  %v1819 = vadd.f32 %v1585, %v1818
  %v1820 = vpop.f32.mrf.mxu0
  %v1821 = vpop.f32.mrf.mxu0
  %1822 = vdwg.mxu0
  %1823 = vmatprep.subr.bf16.mxu0 0
  %1824 = vmatpush1.bf16.msra.mxu0 0
  %1825 = vmatprep.subr.bf16.mxu0 0
  %1826 = vmatpush1.bf16.msra.mxu0 0
  %1827 = vmatprep.subr.bf16.mxu0 0
  %1828 = vmatpush1.bf16.msra.mxu0 0
  %1829 = vmatprep.subr.bf16.mxu0 0
  %1830 = vmatpush1.bf16.msra.mxu0 0
  %1831 = vmatprep.subr.bf16.mxu0 %v1741
  %1832 = vmatpush1.bf16.msra.mxu0 %v1740
  %1833 = vmatprep.subr.bf16.mxu0 %v1733
  %1834 = vmatpush1.bf16.msra.mxu0 %v1732
  %1835 = vmatprep.subr.bf16.mxu0 %v1725
  %1836 = vmatpush1.bf16.msra.mxu0 %v1724
  %1837 = vmatprep.subr.bf16.mxu0 %v1717
  %1838 = vmatpush1.bf16.msra.mxu0 %v1716
  %1839 = vmatprep.subr.bf16.mxu0 0
  %1840 = vmatpush2.bf16.msra.mxu0 0
  %1841 = vmatprep.subr.bf16.mxu0 0
  %1842 = vmatpush2.bf16.msra.mxu0 0
  %1843 = vmatprep.subr.bf16.mxu0 0
  %1844 = vmatpush2.bf16.msra.mxu0 0
  %1845 = vmatprep.subr.bf16.mxu0 0
  %1846 = vmatpush2.bf16.msra.mxu0 0
  %1847 = vmatprep.subr.bf16.mxu0 0
  %1848 = vmatpush2.bf16.msra.mxu0 0
  %1849 = vmatprep.subr.bf16.mxu0 0
  %1850 = vmatpush2.bf16.msra.mxu0 0
  %1851 = vmatprep.subr.bf16.mxu0 0
  %1852 = vmatpush2.bf16.msra.mxu0 0
  %1853 = vmatprep.subr.bf16.mxu0 0
  %1854 = vmatpush2.bf16.msra.mxu0 0
  %1855 = vmatprep.mubr.bf16.mxu0 0
  %1856 = vmatmul.mubr.bf16.gmra.mxu0 %v1780
  %v1857 = vpop.f32.mrf.mxu0
  %v1858 = vadd.f32 %v1589, %v1857
  %v1859 = vpop.f32.mrf.mxu0
  %v1860 = vadd.f32 %v1593, %v1859
  %v1861 = vpop.f32.mrf.mxu0
  %v1862 = vpop.f32.mrf.mxu0
  %1863 = vdwg.mxu0
  %1864 = vmatprep.subr.bf16.mxu0 0
  %1865 = vmatpush1.bf16.msra.mxu0 0
  %1866 = vmatprep.subr.bf16.mxu0 0
  %1867 = vmatpush1.bf16.msra.mxu0 0
  %1868 = vmatprep.subr.bf16.mxu0 0
  %1869 = vmatpush1.bf16.msra.mxu0 0
  %1870 = vmatprep.subr.bf16.mxu0 0
  %1871 = vmatpush1.bf16.msra.mxu0 0
  %1872 = vmatprep.subr.bf16.mxu0 %v1743
  %1873 = vmatpush1.bf16.msra.mxu0 %v1742
  %1874 = vmatprep.subr.bf16.mxu0 %v1735
  %1875 = vmatpush1.bf16.msra.mxu0 %v1734
  %1876 = vmatprep.subr.bf16.mxu0 %v1727
  %1877 = vmatpush1.bf16.msra.mxu0 %v1726
  %1878 = vmatprep.subr.bf16.mxu0 %v1719
  %1879 = vmatpush1.bf16.msra.mxu0 %v1718
  %1880 = vmatprep.subr.bf16.mxu0 0
  %1881 = vmatpush2.bf16.msra.mxu0 0
  %1882 = vmatprep.subr.bf16.mxu0 0
  %1883 = vmatpush2.bf16.msra.mxu0 0
  %1884 = vmatprep.subr.bf16.mxu0 0
  %1885 = vmatpush2.bf16.msra.mxu0 0
  %1886 = vmatprep.subr.bf16.mxu0 0
  %1887 = vmatpush2.bf16.msra.mxu0 0
  %1888 = vmatprep.subr.bf16.mxu0 0
  %1889 = vmatpush2.bf16.msra.mxu0 0
  %1890 = vmatprep.subr.bf16.mxu0 0
  %1891 = vmatpush2.bf16.msra.mxu0 0
  %1892 = vmatprep.subr.bf16.mxu0 0
  %1893 = vmatpush2.bf16.msra.mxu0 0
  %1894 = vmatprep.subr.bf16.mxu0 0
  %1895 = vmatpush2.bf16.msra.mxu0 0
  %1896 = vmatprep.mubr.bf16.mxu0 0
  %1897 = vmatmul.mubr.bf16.gmra.mxu0 %v1780
  %v1898 = vpop.f32.mrf.mxu0
  %v1899 = vadd.f32 %v1597, %v1898
  %v1900 = vpop.f32.mrf.mxu0
  %v1901 = vadd.f32 %v1601, %v1900
  %v1902 = vpop.f32.mrf.mxu0
  %v1903 = vpop.f32.mrf.mxu0
  %1904 = vdwg.mxu0
  %1905 = vmatprep.subr.bf16.mxu0 0
  %1906 = vmatpush1.bf16.msra.mxu0 0
  %1907 = vmatprep.subr.bf16.mxu0 0
  %1908 = vmatpush1.bf16.msra.mxu0 0
  %1909 = vmatprep.subr.bf16.mxu0 0
  %1910 = vmatpush1.bf16.msra.mxu0 0
  %1911 = vmatprep.subr.bf16.mxu0 0
  %1912 = vmatpush1.bf16.msra.mxu0 0
  %1913 = vmatprep.subr.bf16.mxu0 %v1745
  %1914 = vmatpush1.bf16.msra.mxu0 %v1744
  %1915 = vmatprep.subr.bf16.mxu0 %v1737
  %1916 = vmatpush1.bf16.msra.mxu0 %v1736
  %1917 = vmatprep.subr.bf16.mxu0 %v1729
  %1918 = vmatpush1.bf16.msra.mxu0 %v1728
  %1919 = vmatprep.subr.bf16.mxu0 %v1721
  %1920 = vmatpush1.bf16.msra.mxu0 %v1720
  %1921 = vmatprep.subr.bf16.mxu0 0
  %1922 = vmatpush2.bf16.msra.mxu0 0
  %1923 = vmatprep.subr.bf16.mxu0 0
  %1924 = vmatpush2.bf16.msra.mxu0 0
  %1925 = vmatprep.subr.bf16.mxu0 0
  %1926 = vmatpush2.bf16.msra.mxu0 0
  %1927 = vmatprep.subr.bf16.mxu0 0
  %1928 = vmatpush2.bf16.msra.mxu0 0
  %1929 = vmatprep.subr.bf16.mxu0 0
  %1930 = vmatpush2.bf16.msra.mxu0 0
  %1931 = vmatprep.subr.bf16.mxu0 0
  %1932 = vmatpush2.bf16.msra.mxu0 0
  %1933 = vmatprep.subr.bf16.mxu0 0
  %1934 = vmatpush2.bf16.msra.mxu0 0
  %1935 = vmatprep.subr.bf16.mxu0 0
  %1936 = vmatpush2.bf16.msra.mxu0 0
  %1937 = vmatprep.mubr.bf16.mxu0 0
  %1938 = vmatmul.mubr.bf16.gmra.mxu0 %v1780
  %v1939 = vpop.f32.mrf.mxu0
  %v1940 = vadd.f32 %v1605, %v1939
  %v1941 = vpop.f32.mrf.mxu0
  %v1942 = vadd.f32 %v1609, %v1941
  %v1943 = vpop.f32.mrf.mxu0
  %v1944 = vpop.f32.mrf.mxu0
  %1945 = vdwg.mxu0
  %v1946 = vpack.c.bf16 %v1817, %v1817
  %v1947 = vpack.c.bf16 %v1819, %v1819
  %v1948 = vpack.c.bf16 %v1858, %v1858
  %v1949 = vpack.c.bf16 %v1860, %v1860
  %v1950 = vpack.c.bf16 %v1899, %v1899
  %v1951 = vpack.c.bf16 %v1901, %v1901
  %v1952 = vpack.c.bf16 %v1940, %v1940
  %v1953 = vpack.c.bf16 %v1942, %v1942
  %v1954 = vld [vmem:[%s9] sm:$0xf]
  %v1955 = vld [vmem:[%s9 + $0x4] sm:$0xf]
  %v1956 = vld [vmem:[%s9 + $0x8] sm:$0xf]
  %v1957 = vld [vmem:[%s9 + $0xc] sm:$0xf]
  %v1958 = vld [vmem:[%s9 + $0x10] sm:$0xf]
  %v1959 = vld [vmem:[%s9 + $0x14] sm:$0xf]
  %v1960 = vld [vmem:[%s9 + $0x18] sm:$0xf]
  %v1961 = vld [vmem:[%s9 + $0x1c] sm:$0xf]
  %v1962 = vld [vmem:[%s9 + $0x20] sm:$0xf]
  %v1963 = vld [vmem:[%s9 + $0x24] sm:$0xf]
  %v1964 = vld [vmem:[%s9 + $0x28] sm:$0xf]
  %v1965 = vld [vmem:[%s9 + $0x2c] sm:$0xf]
  %v1966 = vld [vmem:[%s9 + $0x30] sm:$0xf]
  %v1967 = vld [vmem:[%s9 + $0x34] sm:$0xf]
  %v1968 = vld [vmem:[%s9 + $0x38] sm:$0xf]
  %v1969 = vld [vmem:[%s9 + $0x3c] sm:$0xf]
  %v1970 = vld [vmem:[%s9 + $0x40] sm:$0xf]
  %v1971 = vld [vmem:[%s9 + $0x44] sm:$0xf]
  %v1972 = vld [vmem:[%s9 + $0x48] sm:$0xf]
  %v1973 = vld [vmem:[%s9 + $0x4c] sm:$0xf]
  %v1974 = vld [vmem:[%s9 + $0x50] sm:$0xf]
  %v1975 = vld [vmem:[%s9 + $0x54] sm:$0xf]
  %v1976 = vld [vmem:[%s9 + $0x58] sm:$0xf]
  %v1977 = vld [vmem:[%s9 + $0x5c] sm:$0xf]
  %v1978 = vld [vmem:[%s9 + $0x60] sm:$0xf]
  %v1979 = vld [vmem:[%s9 + $0x64] sm:$0xf]
  %v1980 = vld [vmem:[%s9 + $0x68] sm:$0xf]
  %v1981 = vld [vmem:[%s9 + $0x6c] sm:$0xf]
  %v1982 = vld [vmem:[%s9 + $0x70] sm:$0xf]
  %v1983 = vld [vmem:[%s9 + $0x74] sm:$0xf]
  %v1984 = vld [vmem:[%s9 + $0x78] sm:$0xf]
  %v1985 = vld [vmem:[%s9 + $0x7c] sm:$0xf]
  %v1986 = vld [vmem:[%s9 + $0x80] sm:$0xf]
  %v1987 = vld [vmem:[%s9 + $0x84] sm:$0xf]
  %v1988 = vld [vmem:[%s9 + $0x88] sm:$0xf]
  %v1989 = vld [vmem:[%s9 + $0x8c] sm:$0xf]
  %v1990 = vld [vmem:[%s9 + $0x90] sm:$0xf]
  %v1991 = vld [vmem:[%s9 + $0x94] sm:$0xf]
  %v1992 = vld [vmem:[%s9 + $0x98] sm:$0xf]
  %v1993 = vld [vmem:[%s9 + $0x9c] sm:$0xf]
  %v1994 = vld [vmem:[%s9 + $0xa0] sm:$0xf]
  %v1995 = vld [vmem:[%s9 + $0xa4] sm:$0xf]
  %v1996 = vld [vmem:[%s9 + $0xa8] sm:$0xf]
  %v1997 = vld [vmem:[%s9 + $0xac] sm:$0xf]
  %v1998 = vld [vmem:[%s9 + $0xb0] sm:$0xf]
  %v1999 = vld [vmem:[%s9 + $0xb4] sm:$0xf]
  %v2000 = vld [vmem:[%s9 + $0xb8] sm:$0xf]
  %v2001 = vld [vmem:[%s9 + $0xbc] sm:$0xf]
  %v2002 = vld [vmem:[%s9 + $0xc0] sm:$0xf]
  %v2003 = vld [vmem:[%s9 + $0xc4] sm:$0xf]
  %v2004 = vld [vmem:[%s9 + $0xc8] sm:$0xf]
  %v2005 = vld [vmem:[%s9 + $0xcc] sm:$0xf]
  %v2006 = vld [vmem:[%s9 + $0xd0] sm:$0xf]
  %v2007 = vld [vmem:[%s9 + $0xd4] sm:$0xf]
  %v2008 = vld [vmem:[%s9 + $0xd8] sm:$0xf]
  %v2009 = vld [vmem:[%s9 + $0xdc] sm:$0xf]
  %v2010 = vld [vmem:[%s9 + $0xe0] sm:$0xf]
  %v2011 = vld [vmem:[%s9 + $0xe4] sm:$0xf]
  %v2012 = vld [vmem:[%s9 + $0xe8] sm:$0xf]
  %v2013 = vld [vmem:[%s9 + $0xec] sm:$0xf]
  %v2014 = vld [vmem:[%s9 + $0xf0] sm:$0xf]
  %v2015 = vld [vmem:[%s9 + $0xf4] sm:$0xf]
  %v2016 = vld [vmem:[%s9 + $0xf8] sm:$0xf]
  %v2017 = vld [vmem:[%s9 + $0xfc] sm:$0xf]
  %v2018 = vld [vmem:[%s9 + $0x100] sm:$0xf]
  %v2019 = vld [vmem:[%s9 + $0x104] sm:$0xf]
  %v2020 = vld [vmem:[%s9 + $0x108] sm:$0xf]
  %v2021 = vld [vmem:[%s9 + $0x10c] sm:$0xf]
  %v2022 = vld [vmem:[%s9 + $0x110] sm:$0xf]
  %v2023 = vld [vmem:[%s9 + $0x114] sm:$0xf]
  %v2024 = vld [vmem:[%s9 + $0x118] sm:$0xf]
  %v2025 = vld [vmem:[%s9 + $0x11c] sm:$0xf]
  %v2026 = vld [vmem:[%s9 + $0x120] sm:$0xf]
  %v2027 = vld [vmem:[%s9 + $0x124] sm:$0xf]
  %v2028 = vld [vmem:[%s9 + $0x128] sm:$0xf]
  %v2029 = vld [vmem:[%s9 + $0x12c] sm:$0xf]
  %v2030 = vld [vmem:[%s9 + $0x130] sm:$0xf]
  %v2031 = vld [vmem:[%s9 + $0x134] sm:$0xf]
  %v2032 = vld [vmem:[%s9 + $0x138] sm:$0xf]
  %v2033 = vld [vmem:[%s9 + $0x13c] sm:$0xf]
  %v2034 = vld [vmem:[%s9 + $0x140] sm:$0xf]
  %v2035 = vld [vmem:[%s9 + $0x144] sm:$0xf]
  %v2036 = vld [vmem:[%s9 + $0x148] sm:$0xf]
  %v2037 = vld [vmem:[%s9 + $0x14c] sm:$0xf]
  %v2038 = vld [vmem:[%s9 + $0x150] sm:$0xf]
  %v2039 = vld [vmem:[%s9 + $0x154] sm:$0xf]
  %v2040 = vld [vmem:[%s9 + $0x158] sm:$0xf]
  %v2041 = vld [vmem:[%s9 + $0x15c] sm:$0xf]
  %v2042 = vld [vmem:[%s9 + $0x160] sm:$0xf]
  %v2043 = vld [vmem:[%s9 + $0x164] sm:$0xf]
  %v2044 = vld [vmem:[%s9 + $0x168] sm:$0xf]
  %v2045 = vld [vmem:[%s9 + $0x16c] sm:$0xf]
  %v2046 = vld [vmem:[%s9 + $0x170] sm:$0xf]
  %v2047 = vld [vmem:[%s9 + $0x174] sm:$0xf]
  %v2048 = vld [vmem:[%s9 + $0x178] sm:$0xf]
  %v2049 = vld [vmem:[%s9 + $0x17c] sm:$0xf]
  %v2050 = vld [vmem:[%s9 + $0x180] sm:$0xf]
  %v2051 = vld [vmem:[%s9 + $0x184] sm:$0xf]
  %v2052 = vld [vmem:[%s9 + $0x188] sm:$0xf]
  %v2053 = vld [vmem:[%s9 + $0x18c] sm:$0xf]
  %v2054 = vld [vmem:[%s9 + $0x190] sm:$0xf]
  %v2055 = vld [vmem:[%s9 + $0x194] sm:$0xf]
  %v2056 = vld [vmem:[%s9 + $0x198] sm:$0xf]
  %v2057 = vld [vmem:[%s9 + $0x19c] sm:$0xf]
  %v2058 = vld [vmem:[%s9 + $0x1a0] sm:$0xf]
  %v2059 = vld [vmem:[%s9 + $0x1a4] sm:$0xf]
  %v2060 = vld [vmem:[%s9 + $0x1a8] sm:$0xf]
  %v2061 = vld [vmem:[%s9 + $0x1ac] sm:$0xf]
  %v2062 = vld [vmem:[%s9 + $0x1b0] sm:$0xf]
  %v2063 = vld [vmem:[%s9 + $0x1b4] sm:$0xf]
  %v2064 = vld [vmem:[%s9 + $0x1b8] sm:$0xf]
  %v2065 = vld [vmem:[%s9 + $0x1bc] sm:$0xf]
  %v2066 = vld [vmem:[%s9 + $0x1c0] sm:$0xf]
  %v2067 = vld [vmem:[%s9 + $0x1c4] sm:$0xf]
  %v2068 = vld [vmem:[%s9 + $0x1c8] sm:$0xf]
  %v2069 = vld [vmem:[%s9 + $0x1cc] sm:$0xf]
  %v2070 = vld [vmem:[%s9 + $0x1d0] sm:$0xf]
  %v2071 = vld [vmem:[%s9 + $0x1d4] sm:$0xf]
  %v2072 = vld [vmem:[%s9 + $0x1d8] sm:$0xf]
  %v2073 = vld [vmem:[%s9 + $0x1dc] sm:$0xf]
  %v2074 = vld [vmem:[%s9 + $0x1e0] sm:$0xf]
  %v2075 = vld [vmem:[%s9 + $0x1e4] sm:$0xf]
  %v2076 = vld [vmem:[%s9 + $0x1e8] sm:$0xf]
  %v2077 = vld [vmem:[%s9 + $0x1ec] sm:$0xf]
  %v2078 = vld [vmem:[%s9 + $0x1f0] sm:$0xf]
  %v2079 = vld [vmem:[%s9 + $0x1f4] sm:$0xf]
  %v2080 = vld [vmem:[%s9 + $0x1f8] sm:$0xf]
  %v2081 = vld [vmem:[%s9 + $0x1fc] sm:$0xf]
  %v2082 = vld [vmem:[%s10] sm:$0x1]
  %v2084 = vlaneseq
  %v2085 = vshrl.u32 %v2084, 7
  %v2086 = vsub.s32 0, %v2085
  %v2087 = vrot.slane %v2082, %v2086
  %v2217 = vunpack.c.l.b16 %v1954
  %v2218 = vunpack.c.l.b16 %v1955
  %v2219 = vunpack.c.l.b16 %v1956
  %v2220 = vunpack.c.l.b16 %v1957
  %v2221 = vunpack.c.l.b16 %v1958
  %v2222 = vunpack.c.l.b16 %v1959
  %v2223 = vunpack.c.l.b16 %v1960
  %v2224 = vunpack.c.l.b16 %v1961
  %v2225 = vunpack.c.l.b16 %v1962
  %v2226 = vunpack.c.l.b16 %v1963
  %v2227 = vunpack.c.l.b16 %v1964
  %v2228 = vunpack.c.l.b16 %v1965
  %v2229 = vunpack.c.l.b16 %v1966
  %v2230 = vunpack.c.l.b16 %v1967
  %v2231 = vunpack.c.l.b16 %v1968
  %v2232 = vunpack.c.l.b16 %v1969
  %v2233 = vunpack.c.l.b16 %v1970
  %v2234 = vunpack.c.l.b16 %v1971
  %v2235 = vunpack.c.l.b16 %v1972
  %v2236 = vunpack.c.l.b16 %v1973
  %v2237 = vunpack.c.l.b16 %v1974
  %v2238 = vunpack.c.l.b16 %v1975
  %v2239 = vunpack.c.l.b16 %v1976
  %v2240 = vunpack.c.l.b16 %v1977
  %v2241 = vunpack.c.l.b16 %v1978
  %v2242 = vunpack.c.l.b16 %v1979
  %v2243 = vunpack.c.l.b16 %v1980
  %v2244 = vunpack.c.l.b16 %v1981
  %v2245 = vunpack.c.l.b16 %v1982
  %v2246 = vunpack.c.l.b16 %v1983
  %v2247 = vunpack.c.l.b16 %v1984
  %v2248 = vunpack.c.l.b16 %v1985
  %v2249 = vunpack.c.l.b16 %v1986
  %v2250 = vunpack.c.l.b16 %v1987
  %v2251 = vunpack.c.l.b16 %v1988
  %v2252 = vunpack.c.l.b16 %v1989
  %v2253 = vunpack.c.l.b16 %v1990
  %v2254 = vunpack.c.l.b16 %v1991
  %v2255 = vunpack.c.l.b16 %v1992
  %v2256 = vunpack.c.l.b16 %v1993
  %v2257 = vunpack.c.l.b16 %v1994
  %v2258 = vunpack.c.l.b16 %v1995
  %v2259 = vunpack.c.l.b16 %v1996
  %v2260 = vunpack.c.l.b16 %v1997
  %v2261 = vunpack.c.l.b16 %v1998
  %v2262 = vunpack.c.l.b16 %v1999
  %v2263 = vunpack.c.l.b16 %v2000
  %v2264 = vunpack.c.l.b16 %v2001
  %v2265 = vunpack.c.l.b16 %v2002
  %v2266 = vunpack.c.l.b16 %v2003
  %v2267 = vunpack.c.l.b16 %v2004
  %v2268 = vunpack.c.l.b16 %v2005
  %v2269 = vunpack.c.l.b16 %v2006
  %v2270 = vunpack.c.l.b16 %v2007
  %v2271 = vunpack.c.l.b16 %v2008
  %v2272 = vunpack.c.l.b16 %v2009
  %v2273 = vunpack.c.l.b16 %v2010
  %v2274 = vunpack.c.l.b16 %v2011
  %v2275 = vunpack.c.l.b16 %v2012
  %v2276 = vunpack.c.l.b16 %v2013
  %v2277 = vunpack.c.l.b16 %v2014
  %v2278 = vunpack.c.l.b16 %v2015
  %v2279 = vunpack.c.l.b16 %v2016
  %v2280 = vunpack.c.l.b16 %v2017
  %v2281 = vunpack.c.l.b16 %v2018
  %v2282 = vunpack.c.l.b16 %v2019
  %v2283 = vunpack.c.l.b16 %v2020
  %v2284 = vunpack.c.l.b16 %v2021
  %v2285 = vunpack.c.l.b16 %v2022
  %v2286 = vunpack.c.l.b16 %v2023
  %v2287 = vunpack.c.l.b16 %v2024
  %v2288 = vunpack.c.l.b16 %v2025
  %v2289 = vunpack.c.l.b16 %v2026
  %v2290 = vunpack.c.l.b16 %v2027
  %v2291 = vunpack.c.l.b16 %v2028
  %v2292 = vunpack.c.l.b16 %v2029
  %v2293 = vunpack.c.l.b16 %v2030
  %v2294 = vunpack.c.l.b16 %v2031
  %v2295 = vunpack.c.l.b16 %v2032
  %v2296 = vunpack.c.l.b16 %v2033
  %v2297 = vunpack.c.l.b16 %v2034
  %v2298 = vunpack.c.l.b16 %v2035
  %v2299 = vunpack.c.l.b16 %v2036
  %v2300 = vunpack.c.l.b16 %v2037
  %v2301 = vunpack.c.l.b16 %v2038
  %v2302 = vunpack.c.l.b16 %v2039
  %v2303 = vunpack.c.l.b16 %v2040
  %v2304 = vunpack.c.l.b16 %v2041
  %v2305 = vunpack.c.l.b16 %v2042
  %v2306 = vunpack.c.l.b16 %v2043
  %v2307 = vunpack.c.l.b16 %v2044
  %v2308 = vunpack.c.l.b16 %v2045
  %v2309 = vunpack.c.l.b16 %v2046
  %v2310 = vunpack.c.l.b16 %v2047
  %v2311 = vunpack.c.l.b16 %v2048
  %v2312 = vunpack.c.l.b16 %v2049
  %v2313 = vunpack.c.l.b16 %v2050
  %v2314 = vunpack.c.l.b16 %v2051
  %v2315 = vunpack.c.l.b16 %v2052
  %v2316 = vunpack.c.l.b16 %v2053
  %v2317 = vunpack.c.l.b16 %v2054
  %v2318 = vunpack.c.l.b16 %v2055
  %v2319 = vunpack.c.l.b16 %v2056
  %v2320 = vunpack.c.l.b16 %v2057
  %v2321 = vunpack.c.l.b16 %v2058
  %v2322 = vunpack.c.l.b16 %v2059
  %v2323 = vunpack.c.l.b16 %v2060
  %v2324 = vunpack.c.l.b16 %v2061
  %v2325 = vunpack.c.l.b16 %v2062
  %v2326 = vunpack.c.l.b16 %v2063
  %v2327 = vunpack.c.l.b16 %v2064
  %v2328 = vunpack.c.l.b16 %v2065
  %v2329 = vunpack.c.l.b16 %v2066
  %v2330 = vunpack.c.l.b16 %v2067
  %v2331 = vunpack.c.l.b16 %v2068
  %v2332 = vunpack.c.l.b16 %v2069
  %v2333 = vunpack.c.l.b16 %v2070
  %v2334 = vunpack.c.l.b16 %v2071
  %v2335 = vunpack.c.l.b16 %v2072
  %v2336 = vunpack.c.l.b16 %v2073
  %v2337 = vunpack.c.l.b16 %v2074
  %v2338 = vunpack.c.l.b16 %v2075
  %v2339 = vunpack.c.l.b16 %v2076
  %v2340 = vunpack.c.l.b16 %v2077
  %v2341 = vunpack.c.l.b16 %v2078
  %v2342 = vunpack.c.l.b16 %v2079
  %v2343 = vunpack.c.l.b16 %v2080
  %v2344 = vunpack.c.l.b16 %v2081
  %v2345 = vpack.c.b16 %v2218, %v2217
  %v2346 = vpack.c.b16 %v2220, %v2219
  %v2347 = vpack.c.b16 %v2222, %v2221
  %v2348 = vpack.c.b16 %v2224, %v2223
  %v2349 = vpack.c.b16 %v2226, %v2225
  %v2350 = vpack.c.b16 %v2228, %v2227
  %v2351 = vpack.c.b16 %v2230, %v2229
  %v2352 = vpack.c.b16 %v2232, %v2231
  %v2353 = vpack.c.b16 %v2234, %v2233
  %v2354 = vpack.c.b16 %v2236, %v2235
  %v2355 = vpack.c.b16 %v2238, %v2237
  %v2356 = vpack.c.b16 %v2240, %v2239
  %v2357 = vpack.c.b16 %v2242, %v2241
  %v2358 = vpack.c.b16 %v2244, %v2243
  %v2359 = vpack.c.b16 %v2246, %v2245
  %v2360 = vpack.c.b16 %v2248, %v2247
  %v2361 = vpack.c.b16 %v2250, %v2249
  %v2362 = vpack.c.b16 %v2252, %v2251
  %v2363 = vpack.c.b16 %v2254, %v2253
  %v2364 = vpack.c.b16 %v2256, %v2255
  %v2365 = vpack.c.b16 %v2258, %v2257
  %v2366 = vpack.c.b16 %v2260, %v2259
  %v2367 = vpack.c.b16 %v2262, %v2261
  %v2368 = vpack.c.b16 %v2264, %v2263
  %v2369 = vpack.c.b16 %v2266, %v2265
  %v2370 = vpack.c.b16 %v2268, %v2267
  %v2371 = vpack.c.b16 %v2270, %v2269
  %v2372 = vpack.c.b16 %v2272, %v2271
  %v2373 = vpack.c.b16 %v2274, %v2273
  %v2374 = vpack.c.b16 %v2276, %v2275
  %v2375 = vpack.c.b16 %v2278, %v2277
  %v2376 = vpack.c.b16 %v2280, %v2279
  %v2377 = vpack.c.b16 %v2282, %v2281
  %v2378 = vpack.c.b16 %v2284, %v2283
  %v2379 = vpack.c.b16 %v2286, %v2285
  %v2380 = vpack.c.b16 %v2288, %v2287
  %v2381 = vpack.c.b16 %v2290, %v2289
  %v2382 = vpack.c.b16 %v2292, %v2291
  %v2383 = vpack.c.b16 %v2294, %v2293
  %v2384 = vpack.c.b16 %v2296, %v2295
  %v2385 = vpack.c.b16 %v2298, %v2297
  %v2386 = vpack.c.b16 %v2300, %v2299
  %v2387 = vpack.c.b16 %v2302, %v2301
  %v2388 = vpack.c.b16 %v2304, %v2303
  %v2389 = vpack.c.b16 %v2306, %v2305
  %v2390 = vpack.c.b16 %v2308, %v2307
  %v2391 = vpack.c.b16 %v2310, %v2309
  %v2392 = vpack.c.b16 %v2312, %v2311
  %v2393 = vpack.c.b16 %v2314, %v2313
  %v2394 = vpack.c.b16 %v2316, %v2315
  %v2395 = vpack.c.b16 %v2318, %v2317
  %v2396 = vpack.c.b16 %v2320, %v2319
  %v2397 = vpack.c.b16 %v2322, %v2321
  %v2398 = vpack.c.b16 %v2324, %v2323
  %v2399 = vpack.c.b16 %v2326, %v2325
  %v2400 = vpack.c.b16 %v2328, %v2327
  %v2401 = vpack.c.b16 %v2330, %v2329
  %v2402 = vpack.c.b16 %v2332, %v2331
  %v2403 = vpack.c.b16 %v2334, %v2333
  %v2404 = vpack.c.b16 %v2336, %v2335
  %v2405 = vpack.c.b16 %v2338, %v2337
  %v2406 = vpack.c.b16 %v2340, %v2339
  %v2407 = vpack.c.b16 %v2342, %v2341
  %v2408 = vpack.c.b16 %v2344, %v2343
  %2473 = vmatprep.subr.bf16.mxu0 0
  %2474 = vmatpush1.bf16.msra.mxu0 %v2352
  %2475 = vmatprep.subr.bf16.mxu0 0
  %2476 = vmatpush1.bf16.msra.mxu0 %v2351
  %2477 = vmatprep.subr.bf16.mxu0 0
  %2478 = vmatpush1.bf16.msra.mxu0 %v2350
  %2479 = vmatprep.subr.bf16.mxu0 0
  %2480 = vmatpush1.bf16.msra.mxu0 %v2349
  %2481 = vmatprep.subr.bf16.mxu0 0
  %2482 = vmatpush1.bf16.msra.mxu0 %v2348
  %2483 = vmatprep.subr.bf16.mxu0 0
  %2484 = vmatpush1.bf16.msra.mxu0 %v2347
  %2485 = vmatprep.subr.bf16.mxu0 0
  %2486 = vmatpush1.bf16.msra.mxu0 %v2346
  %2487 = vmatprep.subr.bf16.mxu0 0
  %2488 = vmatpush1.bf16.msra.mxu0 %v2345
  %2489 = vmatprep.subr.bf16.mxu0 0
  %2490 = vmatpush2.bf16.msra.mxu0 %v2360
  %2491 = vmatprep.subr.bf16.mxu0 0
  %2492 = vmatpush2.bf16.msra.mxu0 %v2359
  %2493 = vmatprep.subr.bf16.mxu0 0
  %2494 = vmatpush2.bf16.msra.mxu0 %v2358
  %2495 = vmatprep.subr.bf16.mxu0 0
  %2496 = vmatpush2.bf16.msra.mxu0 %v2357
  %2497 = vmatprep.subr.bf16.mxu0 0
  %2498 = vmatpush2.bf16.msra.mxu0 %v2356
  %2499 = vmatprep.subr.bf16.mxu0 0
  %2500 = vmatpush2.bf16.msra.mxu0 %v2355
  %2501 = vmatprep.subr.bf16.mxu0 0
  %2502 = vmatpush2.bf16.msra.mxu0 %v2354
  %2503 = vmatprep.subr.bf16.mxu0 0
  %2504 = vmatpush2.bf16.msra.mxu0 %v2353
  %2505 = vmatprep.mubr.bf16.mxu0 %v1947
  %2506 = vmatmul.mubr.bf16.gmra.mxu0 %v1946
  %v2507 = vpop.f32.mrf.mxu0
  %v2508 = vadd.f32 %v2087, %v2507
  %v2509 = vpop.f32.mrf.mxu0
  %v2510 = vpop.f32.mrf.mxu0
  %v2511 = vpop.f32.mrf.mxu0
  %2512 = vdwg.mxu0
  %2513 = vmatprep.subr.bf16.mxu0 0
  %2514 = vmatpush1.bf16.msra.mxu0 %v2368
  %2515 = vmatprep.subr.bf16.mxu0 0
  %2516 = vmatpush1.bf16.msra.mxu0 %v2367
  %2517 = vmatprep.subr.bf16.mxu0 0
  %2518 = vmatpush1.bf16.msra.mxu0 %v2366
  %2519 = vmatprep.subr.bf16.mxu0 0
  %2520 = vmatpush1.bf16.msra.mxu0 %v2365
  %2521 = vmatprep.subr.bf16.mxu0 0
  %2522 = vmatpush1.bf16.msra.mxu0 %v2364
  %2523 = vmatprep.subr.bf16.mxu0 0
  %2524 = vmatpush1.bf16.msra.mxu0 %v2363
  %2525 = vmatprep.subr.bf16.mxu0 0
  %2526 = vmatpush1.bf16.msra.mxu0 %v2362
  %2527 = vmatprep.subr.bf16.mxu0 0
  %2528 = vmatpush1.bf16.msra.mxu0 %v2361
  %2529 = vmatprep.subr.bf16.mxu0 0
  %2530 = vmatpush2.bf16.msra.mxu0 %v2376
  %2531 = vmatprep.subr.bf16.mxu0 0
  %2532 = vmatpush2.bf16.msra.mxu0 %v2375
  %2533 = vmatprep.subr.bf16.mxu0 0
  %2534 = vmatpush2.bf16.msra.mxu0 %v2374
  %2535 = vmatprep.subr.bf16.mxu0 0
  %2536 = vmatpush2.bf16.msra.mxu0 %v2373
  %2537 = vmatprep.subr.bf16.mxu0 0
  %2538 = vmatpush2.bf16.msra.mxu0 %v2372
  %2539 = vmatprep.subr.bf16.mxu0 0
  %2540 = vmatpush2.bf16.msra.mxu0 %v2371
  %2541 = vmatprep.subr.bf16.mxu0 0
  %2542 = vmatpush2.bf16.msra.mxu0 %v2370
  %2543 = vmatprep.subr.bf16.mxu0 0
  %2544 = vmatpush2.bf16.msra.mxu0 %v2369
  %2545 = vmatprep.mubr.bf16.mxu0 %v1949
  %2546 = vmatmul.mubr.bf16.gmra.mxu0 %v1948
  %v2547 = vpop.f32.mrf.mxu0
  %v2548 = vadd.f32 %v2508, %v2547
  %v2549 = vpop.f32.mrf.mxu0
  %v2550 = vpop.f32.mrf.mxu0
  %v2551 = vpop.f32.mrf.mxu0
  %2552 = vdwg.mxu0
  %2553 = vmatprep.subr.bf16.mxu0 0
  %2554 = vmatpush1.bf16.msra.mxu0 %v2384
  %2555 = vmatprep.subr.bf16.mxu0 0
  %2556 = vmatpush1.bf16.msra.mxu0 %v2383
  %2557 = vmatprep.subr.bf16.mxu0 0
  %2558 = vmatpush1.bf16.msra.mxu0 %v2382
  %2559 = vmatprep.subr.bf16.mxu0 0
  %2560 = vmatpush1.bf16.msra.mxu0 %v2381
  %2561 = vmatprep.subr.bf16.mxu0 0
  %2562 = vmatpush1.bf16.msra.mxu0 %v2380
  %2563 = vmatprep.subr.bf16.mxu0 0
  %2564 = vmatpush1.bf16.msra.mxu0 %v2379
  %2565 = vmatprep.subr.bf16.mxu0 0
  %2566 = vmatpush1.bf16.msra.mxu0 %v2378
  %2567 = vmatprep.subr.bf16.mxu0 0
  %2568 = vmatpush1.bf16.msra.mxu0 %v2377
  %2569 = vmatprep.subr.bf16.mxu0 0
  %2570 = vmatpush2.bf16.msra.mxu0 %v2392
  %2571 = vmatprep.subr.bf16.mxu0 0
  %2572 = vmatpush2.bf16.msra.mxu0 %v2391
  %2573 = vmatprep.subr.bf16.mxu0 0
  %2574 = vmatpush2.bf16.msra.mxu0 %v2390
  %2575 = vmatprep.subr.bf16.mxu0 0
  %2576 = vmatpush2.bf16.msra.mxu0 %v2389
  %2577 = vmatprep.subr.bf16.mxu0 0
  %2578 = vmatpush2.bf16.msra.mxu0 %v2388
  %2579 = vmatprep.subr.bf16.mxu0 0
  %2580 = vmatpush2.bf16.msra.mxu0 %v2387
  %2581 = vmatprep.subr.bf16.mxu0 0
  %2582 = vmatpush2.bf16.msra.mxu0 %v2386
  %2583 = vmatprep.subr.bf16.mxu0 0
  %2584 = vmatpush2.bf16.msra.mxu0 %v2385
  %2585 = vmatprep.mubr.bf16.mxu0 %v1951
  %2586 = vmatmul.mubr.bf16.gmra.mxu0 %v1950
  %v2587 = vpop.f32.mrf.mxu0
  %v2588 = vadd.f32 %v2548, %v2587
  %v2589 = vpop.f32.mrf.mxu0
  %v2590 = vpop.f32.mrf.mxu0
  %v2591 = vpop.f32.mrf.mxu0
  %2592 = vdwg.mxu0
  %2593 = vmatprep.subr.bf16.mxu0 0
  %2594 = vmatpush1.bf16.msra.mxu0 %v2400
  %2595 = vmatprep.subr.bf16.mxu0 0
  %2596 = vmatpush1.bf16.msra.mxu0 %v2399
  %2597 = vmatprep.subr.bf16.mxu0 0
  %2598 = vmatpush1.bf16.msra.mxu0 %v2398
  %2599 = vmatprep.subr.bf16.mxu0 0
  %2600 = vmatpush1.bf16.msra.mxu0 %v2397
  %2601 = vmatprep.subr.bf16.mxu0 0
  %2602 = vmatpush1.bf16.msra.mxu0 %v2396
  %2603 = vmatprep.subr.bf16.mxu0 0
  %2604 = vmatpush1.bf16.msra.mxu0 %v2395
  %2605 = vmatprep.subr.bf16.mxu0 0
  %2606 = vmatpush1.bf16.msra.mxu0 %v2394
  %2607 = vmatprep.subr.bf16.mxu0 0
  %2608 = vmatpush1.bf16.msra.mxu0 %v2393
  %2609 = vmatprep.subr.bf16.mxu0 0
  %2610 = vmatpush2.bf16.msra.mxu0 %v2408
  %2611 = vmatprep.subr.bf16.mxu0 0
  %2612 = vmatpush2.bf16.msra.mxu0 %v2407
  %2613 = vmatprep.subr.bf16.mxu0 0
  %2614 = vmatpush2.bf16.msra.mxu0 %v2406
  %2615 = vmatprep.subr.bf16.mxu0 0
  %2616 = vmatpush2.bf16.msra.mxu0 %v2405
  %2617 = vmatprep.subr.bf16.mxu0 0
  %2618 = vmatpush2.bf16.msra.mxu0 %v2404
  %2619 = vmatprep.subr.bf16.mxu0 0
  %2620 = vmatpush2.bf16.msra.mxu0 %v2403
  %2621 = vmatprep.subr.bf16.mxu0 0
  %2622 = vmatpush2.bf16.msra.mxu0 %v2402
  %2623 = vmatprep.subr.bf16.mxu0 0
  %2624 = vmatpush2.bf16.msra.mxu0 %v2401
  %2625 = vmatprep.mubr.bf16.mxu0 %v1953
  %2626 = vmatmul.mubr.bf16.gmra.mxu0 %v1952
  %v2627 = vpop.f32.mrf.mxu0
  %v2628 = vadd.f32 %v2588, %v2627
  %v2629 = vpop.f32.mrf.mxu0
  %v2630 = vpop.f32.mrf.mxu0
  %v2631 = vpop.f32.mrf.mxu0
  %2632 = vdwg.mxu0
  %v2633 = vlaneseq
  %v2634 = vand.u32 %v2633, 127
  %vm2635 = vcmp.ge.s32.totalorder %v2634, 1
  %vm2636 = vcmp.lt.s32.totalorder %v2634, 9
  %vm2637 = vmand %vm2635, %vm2636
  %v2638 = vsel %vm2637, %v2628, -1e+30
  %vm2639 = vcmask 1041408
  %v2640 = vsel %vm2639, %v2638, -inf
  %2641 = vmax.xlane.f32.xlu0 %v2640
  %v2642 = vpop.xlane.xlu0 %2641
  %v2643 = vsub.f32 %v2638, %v2642
  %v2644 = vmul.f32 %v2643, 1.442695
  %v2645 = vpow.pop %v2644
  %v2646 = vsel %vm2637, %v2645, 0.0
  %v2647 = vsel %vm2639, %v2646, 0.0
  %2648 = vadd.xlane.f32.xlu0 %v2647
  %v2649 = vpop.xlane.xlu0 %2648
  %v2650 = vlog2.pop %v2649
  %v2651 = vmul.f32 %v2650, 0.6931472
  %v2652 = vadd.f32 %v2651, %v2642
  %v2653 = vld [vmem:[%s11] sm:$0x3]
  %v2654 = vmul.f32 %v2628, %v2653
  %v2655 = vsel %vm2639, %v2654, 0.0
  %2656 = vadd.xlane.f32.xlu0 %v2655
  %v2657 = vpop.xlane.xlu0 %2656
  %v2658 = vsub.f32 %v2652, %v2657
  %vm2659 = vcmp.eq.s32.totalorder %v2634, 127
  %v2660 = vsel %vm2659, %v2658, %v2628
  %2661 = vst [vmem:[%s12] sm:$0x3] %v2660
  // Predicated region
  $region50: #{ac_discriminator_forward.1} parent=0 // pred_check
    _
  $region51: #{ac_discriminator_forward.1} parent=0 // pred_check_branch
    %2663 = sbr.rel (0) target = $region53
  $region52: #{ac_discriminator_forward.1} parent=0 // pred_region
    _
  $region53: #{ac_discriminator_forward.1} parent=0 // pred_fallthru
    _
  // Predicated region
  $region54: #{ac_discriminator_forward.1} parent=0 // pred_check
    _
  $region55: #{ac_discriminator_forward.1} parent=0 // pred_check_branch
    %2665 = sbr.rel (0) target = $region57
  $region56: #{ac_discriminator_forward.1} parent=0 // pred_region
    _
  $region57: #{ac_discriminator_forward.1} parent=0 // pred_fallthru
    _

</llo_original>
